<compile_context>
chip_gen: v7x
topology: tpu7x:2x2x1
jax: 0.10.0
libtpu: 0.0.40
codegen_flags: <defaults>
</compile_context>

<pallas_src>
import jax
import jax.numpy as jnp
from jax.experimental import pallas as pl
from jax.experimental.pallas import tpu as pltpu

LANE = 128                     # lane width of a vreg (last-dim tiling unit)
_DEFAULT_TILE_TARGET = 8192    # ~3.2 MiB VMEM footprint; amortizes step cost


def under_net_kernel(x_ref,
                     w1_ref, b1_ref,
                     w2_ref, b2_ref,
                     w3_ref, b3_ref,
                     w4_ref, b4_ref,
                     o_ref):
    """Fused Under_Net forward for one batch tile, [features, batch] layout.

    x_ref : (2,  TB)  f32   (lane dim = batch, dense)
    w1    : (20, 2)   b1: (20, 1)
    w2    : (20, 20)  b2: (20, 1)
    w3    : (20, 20)  b3: (20, 1)
    w4    : (1,  20)  b4: (1,  1)
    o_ref : (1,  TB)  f32
    """
    x = x_ref[...]          # (2, TB)
    w1 = w1_ref[...]        # (20, 2)

    # Layer 1 (K=2): two VPU broadcast-mul-adds; skips an MXU push/pop
    # round-trip on a <2%-utilized systolic array.
    h = w1[:, 0:1] * x[0:1, :] + w1[:, 1:2] * x[1:2, :] + b1_ref[...]
    h = jnp.maximum(h, 0.0)                                  # (20, TB)

    # Layers 2 & 3 (20x20): MXU matmuls, batch along lanes.
    h = jnp.dot(w2_ref[...], h, preferred_element_type=jnp.float32) + b2_ref[...]
    h = jnp.maximum(h, 0.0)

    h = jnp.dot(w3_ref[...], h, preferred_element_type=jnp.float32) + b3_ref[...]
    h = jnp.maximum(h, 0.0)

    # Output layer (1x20): lane-dense (1, TB) store.
    y = jnp.dot(w4_ref[...], h, preferred_element_type=jnp.float32) + b4_ref[...]
    o_ref[...] = y.astype(o_ref.dtype)


def _choose_batch_tile(n, target=_DEFAULT_TILE_TARGET):
    """Pick (batch_tile, padded_total) for a batch of n rows.

    - tile is a multiple of 128 (lane width) and <= ~target,
    - the grid keeps >= 2 steps (rounded to an even count when the grid is
      short) so both v7x TensorCores get balanced work (harmless on v5e/v6e),
    - padding beyond simple 128-lane alignment is at most a few lane groups
      (zero for typical power-of-two batches), avoiding an extra HBM pass.
    """
    n_pad = pl.cdiv(n, LANE) * LANE
    n_lanes = n_pad // LANE
    if n_lanes < 2:
        return n_pad, n_pad                     # single step; cannot split
    steps = max(2, pl.cdiv(n_pad, target))
    if steps <= 8 and steps % 2:                # short grids: keep even steps
        steps += 1
    tile = pl.cdiv(n_lanes, steps) * LANE
    grid_steps = pl.cdiv(n_pad, tile)
    return tile, grid_steps * tile


def under_net_forward_t(xt, params, *, batch_tile=None,
                        tile_target=_DEFAULT_TILE_TARGET):
    """Feature-major fast path.  xt: [2, N] f32 -> [1, N] f32.

    Preferred entry point: no wrapper-side transpose of the input, and (for
    batches that are already multiples of 128) no padding copy either.
    """
    (w1, b1), (w2, b2), (w3, b3), (w4, b4) = params
    d_in, N = xt.shape
    assert d_in == w1.shape[1] == 2, (d_in, w1.shape)

    if batch_tile is None:
        batch_tile, n_total = _choose_batch_tile(N, tile_target)
    else:
        assert batch_tile % LANE == 0, batch_tile
        n_total = pl.cdiv(N, batch_tile) * batch_tile

    if n_total != N:
        # Zero-padded tail columns flow through the net and are sliced off.
        xt = jnp.pad(xt, ((0, 0), (0, n_total - N)))

    grid = (n_total // batch_tile,)

    # Full-array BlockSpecs for the (tiny) weights/biases: constant index_map
    # keeps them resident in VMEM across all batch tiles (no per-step re-DMA).
    def full_spec(arr):
        nd = arr.ndim
        return pl.BlockSpec(arr.shape, lambda i, _nd=nd: (0,) * _nd)

    # Rough VMEM need (double-buffered I/O + live f32 temporaries) ~ 400*TB B.
    # Only raise the scoped limit when we'd exceed v5e's 16 MiB default; keep
    # well under v7x's 64 MiB physical VMEM.
    vmem_need = 400 * batch_tile
    cp_kwargs = dict(dimension_semantics=("parallel",))
    if vmem_need > 16 * 2**20:
        cp_kwargs["vmem_limit_bytes"] = int(min(vmem_need * 1.5, 56 * 2**20))

    out_t = pl.pallas_call(
        under_net_kernel,
        out_shape=jax.ShapeDtypeStruct((1, n_total), jnp.float32),
        grid_spec=pltpu.PrefetchScalarGridSpec(
            num_scalar_prefetch=0,
            grid=grid,
            in_specs=[
                pl.BlockSpec((d_in, batch_tile), lambda i: (0, i)),
                full_spec(w1), full_spec(b1),
                full_spec(w2), full_spec(b2),
                full_spec(w3), full_spec(b3),
                full_spec(w4), full_spec(b4),
            ],
            out_specs=pl.BlockSpec((1, batch_tile), lambda i: (0, i)),
        ),
        compiler_params=pltpu.CompilerParams(**cp_kwargs),
    )(xt, w1, b1, w2, b2, w3, b3, w4, b4)

    return out_t[:, :N]                         # [1, N]


def under_net_forward(x, params, **kwargs):
    """PyTorch-orientation wrapper.  x: [N, 2] f32 -> [N, 1] f32.

    Note: this adds one transpose pass over the input; producers that can
    hand data feature-major should call under_net_forward_t directly.
    """
    return under_net_forward_t(x.T, params, **kwargs).T


def init_params(key, layer_mat=(2, 20, 20, 20, 1)):
    """Deterministic init matching the module:
    weights ~ kaiming_normal(mode='fan_out', relu) -> std = sqrt(2 / fan_out),
    biases zero.  Weights stored PyTorch-style as [out, in]; biases as
    [out, 1] so they broadcast over the batch lanes in the kernel."""
    params = []
    for li in range(len(layer_mat) - 1):
        fan_in, fan_out = layer_mat[li], layer_mat[li + 1]
        key, sub = jax.random.split(key)
        std = (2.0 / fan_out) ** 0.5
        w = std * jax.random.normal(sub, (fan_out, fan_in), dtype=jnp.float32)
        b = jnp.zeros((fan_out, 1), dtype=jnp.float32)
        params.append((w, b))
    return params


def under_net_ref(x, params):
    """Pure-JAX reference (standard [batch, features] orientation)."""
    (w1, b1), (w2, b2), (w3, b3), (w4, b4) = params
    h = jnp.maximum(x @ w1.T + b1.T, 0.0)
    h = jnp.maximum(h @ w2.T + b2.T, 0.0)
    h = jnp.maximum(h @ w3.T + b3.T, 0.0)
    return h @ w4.T + b4.T


if __name__ == "__main__":
    key = jax.random.PRNGKey(0)
    k_x, k_p = jax.random.split(key)

    params = init_params(k_p)

    # Main path: producer hands data feature-major (2, N) -> no wrapper
    # transpose, no padding (2048 is a multiple of 128), 2 balanced grid steps.
    N = 2048
    xt = jax.random.normal(k_x, (2, N), dtype=jnp.float32)

    out_t = under_net_forward_t(xt, params)
    out_t = jax.block_until_ready(out_t)

    ref = under_net_ref(xt.T, params)           # [N, 1]
    assert out_t.shape == (1, N), out_t.shape
    assert jnp.allclose(out_t.T, ref, atol=1e-4, rtol=1e-4), (
        "mismatch vs reference, max abs diff = %e"
        % float(jnp.max(jnp.abs(out_t.T - ref))))

    # Also exercise the PyTorch-orientation wrapper on a ragged batch size
    # (checks the lane-alignment padding + tail slicing path).
    N2 = 300
    x2 = jax.random.normal(k_x, (N2, 2), dtype=jnp.float32)
    out2 = jax.block_until_ready(under_net_forward(x2, params))
    ref2 = under_net_ref(x2, params)
    assert out2.shape == (N2, 1), out2.shape
    assert jnp.allclose(out2, ref2, atol=1e-4, rtol=1e-4), (
        "ragged-batch mismatch vs reference, max abs diff = %e"
        % float(jnp.max(jnp.abs(out2 - ref2))))

    print("KERNEL_OK")
</pallas_src>

<mosaic_0001>
module attributes {stable_mosaic.version = 11 : i64} {
  func.func @under_net_kernel(%arg0: i32, %arg1: memref<2x1024xf32, #tpu.memory_space<vmem>>, %arg2: memref<20x2xf32, #tpu.memory_space<vmem>>, %arg3: memref<20x1xf32, #tpu.memory_space<vmem>>, %arg4: memref<20x20xf32, #tpu.memory_space<vmem>>, %arg5: memref<20x1xf32, #tpu.memory_space<vmem>>, %arg6: memref<20x20xf32, #tpu.memory_space<vmem>>, %arg7: memref<20x1xf32, #tpu.memory_space<vmem>>, %arg8: memref<1x20xf32, #tpu.memory_space<vmem>>, %arg9: memref<1x1xf32, #tpu.memory_space<vmem>>, %arg10: memref<1x1024xf32, #tpu.memory_space<vmem>>) attributes {dimension_semantics = [#tpu.dimension_semantics<parallel>], iteration_bounds = array<i64: 2>, scalar_prefetch = 0 : i64, scratch_operands = 0 : i64, tpu.core_type = #tpu.core_type<tc>, window_params = [{transform_indices = @transform_0, window_bounds = array<i64: 2, 1024>}, {pipeline_mode = #tpu.pipeline_mode<synchronous>, transform_indices = @transform_1, window_bounds = array<i64: 20, 2>}, {pipeline_mode = #tpu.pipeline_mode<synchronous>, transform_indices = @transform_2, window_bounds = array<i64: 20, 1>}, {pipeline_mode = #tpu.pipeline_mode<synchronous>, transform_indices = @transform_3, window_bounds = array<i64: 20, 20>}, {pipeline_mode = #tpu.pipeline_mode<synchronous>, transform_indices = @transform_4, window_bounds = array<i64: 20, 1>}, {pipeline_mode = #tpu.pipeline_mode<synchronous>, transform_indices = @transform_5, window_bounds = array<i64: 20, 20>}, {pipeline_mode = #tpu.pipeline_mode<synchronous>, transform_indices = @transform_6, window_bounds = array<i64: 20, 1>}, {pipeline_mode = #tpu.pipeline_mode<synchronous>, transform_indices = @transform_7, window_bounds = array<i64: 1, 20>}, {pipeline_mode = #tpu.pipeline_mode<synchronous>, transform_indices = @transform_8, window_bounds = array<i64: 1, 1>}, {transform_indices = @transform_9, window_bounds = array<i64: 1, 1024>}]} {
    %c0 = arith.constant 0 : index
    %c0_0 = arith.constant 0 : index
    %0 = vector.load %arg1[%c0, %c0_0] : memref<2x1024xf32, #tpu.memory_space<vmem>>, vector<2x1024xf32>
    %c0_1 = arith.constant 0 : index
    %c0_2 = arith.constant 0 : index
    %1 = vector.load %arg2[%c0_1, %c0_2] : memref<20x2xf32, #tpu.memory_space<vmem>>, vector<20x2xf32>
    %2 = vector.extract_strided_slice %1 {offsets = [0, 0], sizes = [20, 1], strides = [1, 1]} : vector<20x2xf32> to vector<20x1xf32>
    %3 = vector.extract_strided_slice %0 {offsets = [0, 0], sizes = [1, 1024], strides = [1, 1]} : vector<2x1024xf32> to vector<1x1024xf32>
    %4 = vector.broadcast %2 : vector<20x1xf32> to vector<20x1024xf32>
    %5 = vector.broadcast %3 : vector<1x1024xf32> to vector<20x1024xf32>
    %6 = arith.mulf %4, %5 : vector<20x1024xf32>
    %7 = vector.extract_strided_slice %1 {offsets = [0, 1], sizes = [20, 1], strides = [1, 1]} : vector<20x2xf32> to vector<20x1xf32>
    %8 = vector.extract_strided_slice %0 {offsets = [1, 0], sizes = [1, 1024], strides = [1, 1]} : vector<2x1024xf32> to vector<1x1024xf32>
    %9 = vector.broadcast %7 : vector<20x1xf32> to vector<20x1024xf32>
    %10 = vector.broadcast %8 : vector<1x1024xf32> to vector<20x1024xf32>
    %11 = arith.mulf %9, %10 : vector<20x1024xf32>
    %12 = arith.addf %6, %11 : vector<20x1024xf32>
    %c0_3 = arith.constant 0 : index
    %c0_4 = arith.constant 0 : index
    %13 = vector.load %arg3[%c0_3, %c0_4] : memref<20x1xf32, #tpu.memory_space<vmem>>, vector<20x1xf32>
    %14 = vector.broadcast %13 : vector<20x1xf32> to vector<20x1024xf32>
    %15 = arith.addf %12, %14 : vector<20x1024xf32>
    %cst = arith.constant 0.000000e+00 : f32
    %16 = vector.broadcast %cst : f32 to vector<20x1024xf32>
    %17 = arith.maximumf %15, %16 : vector<20x1024xf32>
    %c0_5 = arith.constant 0 : index
    %c0_6 = arith.constant 0 : index
    %18 = vector.load %arg4[%c0_5, %c0_6] : memref<20x20xf32, #tpu.memory_space<vmem>>, vector<20x20xf32>
    %cst_7 = arith.constant dense<0.000000e+00> : vector<20x1024xf32>
    %19 = tpu.matmul %18, %17, %cst_7 {dimension_numbers = #tpu.dot_dimension_numbers<[1], [0], [0], [1], [0, 0, 1, 1], [], []>} : vector<20x20xf32>, vector<20x1024xf32>, vector<20x1024xf32> -> vector<20x1024xf32>
    %c0_8 = arith.constant 0 : index
    %c0_9 = arith.constant 0 : index
    %20 = vector.load %arg5[%c0_8, %c0_9] : memref<20x1xf32, #tpu.memory_space<vmem>>, vector<20x1xf32>
    %21 = vector.broadcast %20 : vector<20x1xf32> to vector<20x1024xf32>
    %22 = arith.addf %19, %21 : vector<20x1024xf32>
    %cst_10 = arith.constant 0.000000e+00 : f32
    %23 = vector.broadcast %cst_10 : f32 to vector<20x1024xf32>
    %24 = arith.maximumf %22, %23 : vector<20x1024xf32>
    %c0_11 = arith.constant 0 : index
    %c0_12 = arith.constant 0 : index
    %25 = vector.load %arg6[%c0_11, %c0_12] : memref<20x20xf32, #tpu.memory_space<vmem>>, vector<20x20xf32>
    %cst_13 = arith.constant dense<0.000000e+00> : vector<20x1024xf32>
    %26 = tpu.matmul %25, %24, %cst_13 {dimension_numbers = #tpu.dot_dimension_numbers<[1], [0], [0], [1], [0, 0, 1, 1], [], []>} : vector<20x20xf32>, vector<20x1024xf32>, vector<20x1024xf32> -> vector<20x1024xf32>
    %c0_14 = arith.constant 0 : index
    %c0_15 = arith.constant 0 : index
    %27 = vector.load %arg7[%c0_14, %c0_15] : memref<20x1xf32, #tpu.memory_space<vmem>>, vector<20x1xf32>
    %28 = vector.broadcast %27 : vector<20x1xf32> to vector<20x1024xf32>
    %29 = arith.addf %26, %28 : vector<20x1024xf32>
    %cst_16 = arith.constant 0.000000e+00 : f32
    %30 = vector.broadcast %cst_16 : f32 to vector<20x1024xf32>
    %31 = arith.maximumf %29, %30 : vector<20x1024xf32>
    %c0_17 = arith.constant 0 : index
    %c0_18 = arith.constant 0 : index
    %32 = vector.load %arg8[%c0_17, %c0_18] : memref<1x20xf32, #tpu.memory_space<vmem>>, vector<1x20xf32>
    %cst_19 = arith.constant dense<0.000000e+00> : vector<1x1024xf32>
    %33 = tpu.matmul %32, %31, %cst_19 {dimension_numbers = #tpu.dot_dimension_numbers<[1], [0], [0], [1], [0, 0, 1, 1], [], []>} : vector<1x20xf32>, vector<20x1024xf32>, vector<1x1024xf32> -> vector<1x1024xf32>
    %c0_20 = arith.constant 0 : index
    %c0_21 = arith.constant 0 : index
    %34 = vector.load %arg9[%c0_20, %c0_21] : memref<1x1xf32, #tpu.memory_space<vmem>>, vector<1x1xf32>
    %35 = vector.broadcast %34 : vector<1x1xf32> to vector<1x1024xf32>
    %36 = arith.addf %33, %35 : vector<1x1024xf32>
    %c0_22 = arith.constant 0 : index
    %c0_23 = arith.constant 0 : index
    %37 = vector.load %arg10[%c0_22, %c0_23] : memref<1x1024xf32, #tpu.memory_space<vmem>>, vector<1x1024xf32>
    tpu.vector_store %arg10[%c0_22, %c0_23], %36 {strides = array<i32>} : memref<1x1024xf32, #tpu.memory_space<vmem>>, vector<1x1024xf32>,
    return
  }
  func.func @transform_0(%arg0: i32) -> (i32, i32) {
    %c0_i32 = arith.constant 0 : i32
    %c0_i32_0 = arith.constant 0 : i32
    return %c0_i32, %arg0 : i32, i32
  }
  func.func @transform_1(%arg0: i32) -> (i32, i32) {
    %c0_i32 = arith.constant 0 : i32
    %c0_i32_0 = arith.constant 0 : i32
    %c0_i32_1 = arith.constant 0 : i32
    return %c0_i32, %c0_i32_0 : i32, i32
  }
  func.func @transform_2(%arg0: i32) -> (i32, i32) {
    %c0_i32 = arith.constant 0 : i32
    %c0_i32_0 = arith.constant 0 : i32
    %c0_i32_1 = arith.constant 0 : i32
    return %c0_i32, %c0_i32_0 : i32, i32
  }
  func.func @transform_3(%arg0: i32) -> (i32, i32) {
    %c0_i32 = arith.constant 0 : i32
    %c0_i32_0 = arith.constant 0 : i32
    %c0_i32_1 = arith.constant 0 : i32
    return %c0_i32, %c0_i32_0 : i32, i32
  }
  func.func @transform_4(%arg0: i32) -> (i32, i32) {
    %c0_i32 = arith.constant 0 : i32
    %c0_i32_0 = arith.constant 0 : i32
    %c0_i32_1 = arith.constant 0 : i32
    return %c0_i32, %c0_i32_0 : i32, i32
  }
  func.func @transform_5(%arg0: i32) -> (i32, i32) {
    %c0_i32 = arith.constant 0 : i32
    %c0_i32_0 = arith.constant 0 : i32
    %c0_i32_1 = arith.constant 0 : i32
    return %c0_i32, %c0_i32_0 : i32, i32
  }
  func.func @transform_6(%arg0: i32) -> (i32, i32) {
    %c0_i32 = arith.constant 0 : i32
    %c0_i32_0 = arith.constant 0 : i32
    %c0_i32_1 = arith.constant 0 : i32
    return %c0_i32, %c0_i32_0 : i32, i32
  }
  func.func @transform_7(%arg0: i32) -> (i32, i32) {
    %c0_i32 = arith.constant 0 : i32
    %c0_i32_0 = arith.constant 0 : i32
    %c0_i32_1 = arith.constant 0 : i32
    return %c0_i32, %c0_i32_0 : i32, i32
  }
  func.func @transform_8(%arg0: i32) -> (i32, i32) {
    %c0_i32 = arith.constant 0 : i32
    %c0_i32_0 = arith.constant 0 : i32
    %c0_i32_1 = arith.constant 0 : i32
    return %c0_i32, %c0_i32_0 : i32, i32
  }
  func.func @transform_9(%arg0: i32) -> (i32, i32) {
    %c0_i32 = arith.constant 0 : i32
    %c0_i32_0 = arith.constant 0 : i32
    return %c0_i32, %arg0 : i32, i32
  }
}

</mosaic_0001>

<llo_original>
// kernel: tpu_custom_call.1
$region0: #{tpu_custom_call.1}
  #allocation0 [shape = 'u32[]', space=smem, size = 0x4, offset = 0x4, fixed_abs, tag = 'smem constant byte address 0x4 - core index']
  #allocation1 [shape = 'u32[144,128]{1,0:T(1,128)}', space=vmem, size = 0x12000, scoped, tag = 'internal scratch']
  #allocation2 [shape = 'f32[1,1]{1,0:T(1,128)S(1)}', space=vmem, size = 0x200, scoped, tag = 'scoped memory for tpu_custom_call.1']
  %s0 = inlined_call_operand.vmem [shape: f32[2,2048], index: 0, kind: input, shape index: {}]
  %s1 = inlined_call_operand.vmem [shape: f32[20,2], index: 1, kind: input, shape index: {}]
  %s2 = inlined_call_operand.vmem [shape: f32[20,1], index: 2, kind: input, shape index: {}]
  %s3 = inlined_call_operand.vmem [shape: f32[20,20], index: 3, kind: input, shape index: {}]
  %s4 = inlined_call_operand.vmem [shape: f32[20,1], index: 4, kind: input, shape index: {}]
  %s5 = inlined_call_operand.vmem [shape: f32[20,20], index: 5, kind: input, shape index: {}]
  %s6 = inlined_call_operand.vmem [shape: f32[20,1], index: 6, kind: input, shape index: {}]
  %s7 = inlined_call_operand.vmem [shape: f32[1,20], index: 7, kind: input, shape index: {}]
  %s8 = inlined_call_operand.<no memory space> [shape: f32[1,1], index: 8, kind: input, shape index: {}]
  %s9 = inlined_call_operand.hbm [shape: f32[1,2048], index: 9, kind: output, shape index: {}]
  %s10 = sld [smem:[#allocation0]]
  $region69: #{tpu_custom_call.1} parent=0
    _
  %s12 = ssub.s32 1, %s10
  %s13 = scalar_select 0, %s12, %s10
  %v14 = vstv %s8
  %15 = vst [vmem:[#allocation2] sm:$0x1] %v14
  $region1: #{tpu_custom_call.1} parent=0
    #allocation3 [shape = 'u8[8192]{0}', space=vmem, size = 0x2000, scoped, tag = 'output window, operand 0']
    #allocation4 [shape = 's32[2]{0}', space=sflag, size = 0x8, scoped, tag = 'scoped memory for tpu_custom_call.1']
    %16 = vsyncpa [#allocation4], 0
    %s17 = scalar_lea.sflag [#allocation4], 1
    %18 = vsyncpa %s17, 0
    loop: start=0, step=1, limit=4
    $region2: #{tpu_custom_call.1} parent=1 // loop_pre_header
      _
    $region3: #{tpu_custom_call.1} parent=1 // loop_header
      %s20 = sphi 0, %s24
      %p21 = scmp.ge.s32.totalorder %s20, 4
      %s30 = sphi 0, %s32
      %s33 = sphi 0, %s30
      %s34 = sphi 0, %s33
      %s50 = sphi 0, %s34
      %s54 = sphi 0, %s54
      %s56 = sphi 0, %s54
      %s57 = sphi 0, %s56
      %s71 = sphi 0, %s57
      %s75 = sphi 0, %s75
      %s77 = sphi 0, %s75
      %s78 = sphi 0, %s77
      %s92 = sphi 0, %s78
      %s96 = sphi 0, %s96
      %s98 = sphi 0, %s96
      %s99 = sphi 0, %s98
      %s113 = sphi 0, %s99
      %s117 = sphi 0, %s117
      %s119 = sphi 0, %s117
      %s120 = sphi 0, %s119
      %s134 = sphi 0, %s120
      %s138 = sphi 0, %s138
      %s140 = sphi 0, %s138
      %s141 = sphi 0, %s140
      %s155 = sphi 0, %s141
      %s159 = sphi 0, %s159
      %s161 = sphi 0, %s159
      %s162 = sphi 0, %s161
      %s176 = sphi 0, %s162
      %s180 = sphi 0, %s180
      %s182 = sphi 0, %s180
      %s183 = sphi 0, %s182
      %s197 = sphi 0, %s183
      %s201 = sphi 0, %s201
      %s203 = sphi 0, %s201
      %s204 = sphi 0, %s203
      %s218 = sphi 0, %s204
      %s224 = sphi 0, %s226
      %s227 = sphi 0, %s224
      %s228 = sphi 0, %s227
      %s244 = sphi 0, %s228
    $region4: #{tpu_custom_call.1} parent=1 // loop_header_branch
      %23 = sbr.rel (%p21) target = $region8
    $region5: #{tpu_custom_call.1} parent=1 // loop_body
      %s25 = ssub.s32 %s20, 1
      %s26 = ssub.s32 %s20, 2
      %s27 = sadd.s32 %s20, 1
      %s28 = ssub.s32 %s20, %s27
      %p29 = scmp.eq.s32.totalorder %s28, 0
      %s31 = sadd.s32 %s30, 1
      %s32 = scalar_select %p29, %s30, %s31
      %p35 = pneg %p29
      %p36 = scmp.eq.s32.totalorder %s20, 1
      %p37 = por %p35, %p36
      %p38 = scmp.ne.s32.totalorder %s30, %s33
      %p39 = scmp.eq.s32.totalorder %s20, 0
      %p40 = por %p38, %p39
      %p41 = scmp.ne.s32.totalorder %s30, %s33
      %p42 = scmp.eq.s32.totalorder %s25, 1
      %p43 = por %p41, %p42
      %p44 = scmp.ne.s32.totalorder %s33, %s34
      %p45 = scmp.eq.s32.totalorder %s25, 0
      %p46 = por %p44, %p45
      %p47 = scmp.ne.s32.totalorder %s33, %s34
      %p48 = scmp.eq.s32.totalorder %s26, 1
      %p49 = por %p47, %p48
      %p51 = scmp.ne.s32.totalorder %s34, %s50
      %p52 = scmp.eq.s32.totalorder %s26, 0
      %p53 = por %p51, %p52
      %s55 = sadd.s32 %s54, 1
      %p58 = scmp.eq.s32.totalorder %s20, 1
      %p59 = scmp.ne.s32.totalorder %s54, %s56
      %p60 = scmp.eq.s32.totalorder %s20, 0
      %p61 = por %p59, %p60
      %p62 = scmp.ne.s32.totalorder %s54, %s56
      %p63 = scmp.eq.s32.totalorder %s25, 1
      %p64 = por %p62, %p63
      %p65 = scmp.ne.s32.totalorder %s56, %s57
      %p66 = scmp.eq.s32.totalorder %s25, 0
      %p67 = por %p65, %p66
      %p68 = scmp.ne.s32.totalorder %s56, %s57
      %p69 = scmp.eq.s32.totalorder %s26, 1
      %p70 = por %p68, %p69
      %p72 = scmp.ne.s32.totalorder %s57, %s71
      %p73 = scmp.eq.s32.totalorder %s26, 0
      %p74 = por %p72, %p73
      %s76 = sadd.s32 %s75, 1
      %p79 = scmp.eq.s32.totalorder %s20, 1
      %p80 = scmp.ne.s32.totalorder %s75, %s77
      %p81 = scmp.eq.s32.totalorder %s20, 0
      %p82 = por %p80, %p81
      %p83 = scmp.ne.s32.totalorder %s75, %s77
      %p84 = scmp.eq.s32.totalorder %s25, 1
      %p85 = por %p83, %p84
      %p86 = scmp.ne.s32.totalorder %s77, %s78
      %p87 = scmp.eq.s32.totalorder %s25, 0
      %p88 = por %p86, %p87
      %p89 = scmp.ne.s32.totalorder %s77, %s78
      %p90 = scmp.eq.s32.totalorder %s26, 1
      %p91 = por %p89, %p90
      %p93 = scmp.ne.s32.totalorder %s78, %s92
      %p94 = scmp.eq.s32.totalorder %s26, 0
      %p95 = por %p93, %p94
      %s97 = sadd.s32 %s96, 1
      %p100 = scmp.eq.s32.totalorder %s20, 1
      %p101 = scmp.ne.s32.totalorder %s96, %s98
      %p102 = scmp.eq.s32.totalorder %s20, 0
      %p103 = por %p101, %p102
      %p104 = scmp.ne.s32.totalorder %s96, %s98
      %p105 = scmp.eq.s32.totalorder %s25, 1
      %p106 = por %p104, %p105
      %p107 = scmp.ne.s32.totalorder %s98, %s99
      %p108 = scmp.eq.s32.totalorder %s25, 0
      %p109 = por %p107, %p108
      %p110 = scmp.ne.s32.totalorder %s98, %s99
      %p111 = scmp.eq.s32.totalorder %s26, 1
      %p112 = por %p110, %p111
      %p114 = scmp.ne.s32.totalorder %s99, %s113
      %p115 = scmp.eq.s32.totalorder %s26, 0
      %p116 = por %p114, %p115
      %s118 = sadd.s32 %s117, 1
      %p121 = scmp.eq.s32.totalorder %s20, 1
      %p122 = scmp.ne.s32.totalorder %s117, %s119
      %p123 = scmp.eq.s32.totalorder %s20, 0
      %p124 = por %p122, %p123
      %p125 = scmp.ne.s32.totalorder %s117, %s119
      %p126 = scmp.eq.s32.totalorder %s25, 1
      %p127 = por %p125, %p126
      %p128 = scmp.ne.s32.totalorder %s119, %s120
      %p129 = scmp.eq.s32.totalorder %s25, 0
      %p130 = por %p128, %p129
      %p131 = scmp.ne.s32.totalorder %s119, %s120
      %p132 = scmp.eq.s32.totalorder %s26, 1
      %p133 = por %p131, %p132
      %p135 = scmp.ne.s32.totalorder %s120, %s134
      %p136 = scmp.eq.s32.totalorder %s26, 0
      %p137 = por %p135, %p136
      %s139 = sadd.s32 %s138, 1
      %p142 = scmp.eq.s32.totalorder %s20, 1
      %p143 = scmp.ne.s32.totalorder %s138, %s140
      %p144 = scmp.eq.s32.totalorder %s20, 0
      %p145 = por %p143, %p144
      %p146 = scmp.ne.s32.totalorder %s138, %s140
      %p147 = scmp.eq.s32.totalorder %s25, 1
      %p148 = por %p146, %p147
      %p149 = scmp.ne.s32.totalorder %s140, %s141
      %p150 = scmp.eq.s32.totalorder %s25, 0
      %p151 = por %p149, %p150
      %p152 = scmp.ne.s32.totalorder %s140, %s141
      %p153 = scmp.eq.s32.totalorder %s26, 1
      %p154 = por %p152, %p153
      %p156 = scmp.ne.s32.totalorder %s141, %s155
      %p157 = scmp.eq.s32.totalorder %s26, 0
      %p158 = por %p156, %p157
      %s160 = sadd.s32 %s159, 1
      %p163 = scmp.eq.s32.totalorder %s20, 1
      %p164 = scmp.ne.s32.totalorder %s159, %s161
      %p165 = scmp.eq.s32.totalorder %s20, 0
      %p166 = por %p164, %p165
      %p167 = scmp.ne.s32.totalorder %s159, %s161
      %p168 = scmp.eq.s32.totalorder %s25, 1
      %p169 = por %p167, %p168
      %p170 = scmp.ne.s32.totalorder %s161, %s162
      %p171 = scmp.eq.s32.totalorder %s25, 0
      %p172 = por %p170, %p171
      %p173 = scmp.ne.s32.totalorder %s161, %s162
      %p174 = scmp.eq.s32.totalorder %s26, 1
      %p175 = por %p173, %p174
      %p177 = scmp.ne.s32.totalorder %s162, %s176
      %p178 = scmp.eq.s32.totalorder %s26, 0
      %p179 = por %p177, %p178
      %s181 = sadd.s32 %s180, 1
      %p184 = scmp.eq.s32.totalorder %s20, 1
      %p185 = scmp.ne.s32.totalorder %s180, %s182
      %p186 = scmp.eq.s32.totalorder %s20, 0
      %p187 = por %p185, %p186
      %p188 = scmp.ne.s32.totalorder %s180, %s182
      %p189 = scmp.eq.s32.totalorder %s25, 1
      %p190 = por %p188, %p189
      %p191 = scmp.ne.s32.totalorder %s182, %s183
      %p192 = scmp.eq.s32.totalorder %s25, 0
      %p193 = por %p191, %p192
      %p194 = scmp.ne.s32.totalorder %s182, %s183
      %p195 = scmp.eq.s32.totalorder %s26, 1
      %p196 = por %p194, %p195
      %p198 = scmp.ne.s32.totalorder %s183, %s197
      %p199 = scmp.eq.s32.totalorder %s26, 0
      %p200 = por %p198, %p199
      %s202 = sadd.s32 %s201, 1
      %p205 = scmp.eq.s32.totalorder %s20, 1
      %p206 = scmp.ne.s32.totalorder %s201, %s203
      %p207 = scmp.eq.s32.totalorder %s20, 0
      %p208 = por %p206, %p207
      %p209 = scmp.ne.s32.totalorder %s201, %s203
      %p210 = scmp.eq.s32.totalorder %s25, 1
      %p211 = por %p209, %p210
      %p212 = scmp.ne.s32.totalorder %s203, %s204
      %p213 = scmp.eq.s32.totalorder %s25, 0
      %p214 = por %p212, %p213
      %p215 = scmp.ne.s32.totalorder %s203, %s204
      %p216 = scmp.eq.s32.totalorder %s26, 1
      %p217 = por %p215, %p216
      %p219 = scmp.ne.s32.totalorder %s204, %s218
      %p220 = scmp.eq.s32.totalorder %s26, 0
      %p221 = por %p219, %p220
      %s222 = ssub.s32 %s20, %s27
      %p223 = scmp.eq.s32.totalorder %s222, 0
      %s225 = sadd.s32 %s224, 1
      %s226 = scalar_select %p223, %s224, %s225
      %p229 = pneg %p223
      %p230 = scmp.eq.s32.totalorder %s20, 1
      %p231 = por %p229, %p230
      %p232 = scmp.ne.s32.totalorder %s224, %s227
      %p233 = scmp.eq.s32.totalorder %s20, 0
      %p234 = por %p232, %p233
      %p235 = scmp.ne.s32.totalorder %s224, %s227
      %p236 = scmp.eq.s32.totalorder %s25, 1
      %p237 = por %p235, %p236
      %p238 = scmp.ne.s32.totalorder %s227, %s228
      %p239 = scmp.eq.s32.totalorder %s25, 0
      %p240 = por %p238, %p239
      %p241 = scmp.ne.s32.totalorder %s227, %s228
      %p242 = scmp.eq.s32.totalorder %s26, 1
      %p243 = por %p241, %p242
      %p245 = scmp.ne.s32.totalorder %s228, %s244
      %p246 = scmp.eq.s32.totalorder %s26, 0
      %p247 = por %p245, %p246
      %p248 = scmp.le.s32.totalorder 1, %s20
      %p249 = scmp.lt.s32.totalorder %s20, 3
      %p250 = pnand %p248, %p249
      %p251 = pneg %p250
      // Predicated region
      $region9: #{tpu_custom_call.1} parent=5 // pred_check
        _
      $region10: #{tpu_custom_call.1} parent=5 // pred_check_branch
        %253 = sbr.rel (%p250) target = $region12
      $region11: #{tpu_custom_call.1} parent=5 // pred_region
        %s254 = ssub.s32 %s20, 1
        // Predicated region
        $region13: #{tpu_custom_call.1} parent=11 // pred_check
          %p255 = pneg %p67
        $region14: #{tpu_custom_call.1} parent=11 // pred_check_branch
          %257 = sbr.rel (%p255) target = $region16
        $region15: #{tpu_custom_call.1} parent=11 // pred_region
          _
        $region16: #{tpu_custom_call.1} parent=11 // pred_fallthru
          _
        // Predicated region
        $region17: #{tpu_custom_call.1} parent=11 // pred_check
          %p258 = pneg %p88
        $region18: #{tpu_custom_call.1} parent=11 // pred_check_branch
          %260 = sbr.rel (%p258) target = $region20
        $region19: #{tpu_custom_call.1} parent=11 // pred_region
          _
        $region20: #{tpu_custom_call.1} parent=11 // pred_fallthru
          _
        // Predicated region
        $region21: #{tpu_custom_call.1} parent=11 // pred_check
          %p261 = pneg %p109
        $region22: #{tpu_custom_call.1} parent=11 // pred_check_branch
          %263 = sbr.rel (%p261) target = $region24
        $region23: #{tpu_custom_call.1} parent=11 // pred_region
          _
        $region24: #{tpu_custom_call.1} parent=11 // pred_fallthru
          _
        // Predicated region
        $region25: #{tpu_custom_call.1} parent=11 // pred_check
          %p264 = pneg %p130
        $region26: #{tpu_custom_call.1} parent=11 // pred_check_branch
          %266 = sbr.rel (%p264) target = $region28
        $region27: #{tpu_custom_call.1} parent=11 // pred_region
          _
        $region28: #{tpu_custom_call.1} parent=11 // pred_fallthru
          _
        // Predicated region
        $region29: #{tpu_custom_call.1} parent=11 // pred_check
          %p267 = pneg %p151
        $region30: #{tpu_custom_call.1} parent=11 // pred_check_branch
          %269 = sbr.rel (%p267) target = $region32
        $region31: #{tpu_custom_call.1} parent=11 // pred_region
          _
        $region32: #{tpu_custom_call.1} parent=11 // pred_fallthru
          _
        // Predicated region
        $region33: #{tpu_custom_call.1} parent=11 // pred_check
          %p270 = pneg %p172
        $region34: #{tpu_custom_call.1} parent=11 // pred_check_branch
          %272 = sbr.rel (%p270) target = $region36
        $region35: #{tpu_custom_call.1} parent=11 // pred_region
          _
        $region36: #{tpu_custom_call.1} parent=11 // pred_fallthru
          _
        // Predicated region
        $region37: #{tpu_custom_call.1} parent=11 // pred_check
          %p273 = pneg %p193
        $region38: #{tpu_custom_call.1} parent=11 // pred_check_branch
          %275 = sbr.rel (%p273) target = $region40
        $region39: #{tpu_custom_call.1} parent=11 // pred_region
          _
        $region40: #{tpu_custom_call.1} parent=11 // pred_fallthru
          _
        // Predicated region
        $region41: #{tpu_custom_call.1} parent=11 // pred_check
          %p276 = pneg %p214
        $region42: #{tpu_custom_call.1} parent=11 // pred_check_branch
          %278 = sbr.rel (%p276) target = $region44
        $region43: #{tpu_custom_call.1} parent=11 // pred_region
          _
        $region44: #{tpu_custom_call.1} parent=11 // pred_fallthru
          _
      $region12: #{tpu_custom_call.1} parent=5 // pred_fallthru
        _
      %p279 = scmp.lt.s32.totalorder %s20, 2
      // Predicated region
      $region45: #{tpu_custom_call.1} parent=5 // pred_check
        %p280 = pneg %p279
      $region46: #{tpu_custom_call.1} parent=5 // pred_check_branch
        %282 = sbr.rel (%p280) target = $region48
      $region47: #{tpu_custom_call.1} parent=5 // pred_region
        // Predicated region
        $region49: #{tpu_custom_call.1} parent=47 // pred_check
          %p283 = pneg %p40
        $region50: #{tpu_custom_call.1} parent=47 // pred_check_branch
          %285 = sbr.rel (%p283) target = $region52
        $region51: #{tpu_custom_call.1} parent=47 // pred_region
          %s286 = smul.u32 8, %s20
          %p287 = scmp.lt.s32.totalorder %s286, 15
          %s288 = scalar_select %p287, %s286, 15
          %s289 = smul.addr %s288, 2
          %s290 = scalar_lea.vmem %s0, %s289
          %s291 = smul.u32 8, %s20
        $region52: #{tpu_custom_call.1} parent=47 // pred_fallthru
          _
      $region48: #{tpu_custom_call.1} parent=5 // pred_fallthru
        _
      %p292 = scmp.le.s32.totalorder 1, %s20
      %p293 = scmp.lt.s32.totalorder %s20, 3
      %p294 = pnand %p292, %p293
      %p295 = pneg %p294
      // Predicated region
      $region53: #{tpu_custom_call.1} parent=5 // pred_check
        _
      $region54: #{tpu_custom_call.1} parent=5 // pred_check_branch
        %297 = sbr.rel (%p294) target = $region56
      $region55: #{tpu_custom_call.1} parent=5 // pred_region
        %s298 = ssub.s32 %s20, 1
        %s299 = smul.u32 8, %s25
        %p300 = scmp.lt.s32.totalorder %s299, 15
        %s301 = scalar_select %p300, %s299, 15
        %s302 = smul.addr %s301, 2
        %s303 = scalar_lea.vmem %s0, %s302
        %p304 = pneg %p46
        %p305 = pneg %p43
        %p306 = pneg %p67
        %p307 = pneg %p64
        %p308 = pneg %p88
        %p309 = pneg %p85
        %p310 = pneg %p109
        %p311 = pneg %p106
        %p312 = pneg %p130
        %p313 = pneg %p127
        %p314 = pneg %p151
        %p315 = pneg %p148
        %p316 = pneg %p172
        %p317 = pneg %p169
        %p318 = pneg %p193
        %p319 = pneg %p190
        %p320 = pneg %p214
        %p321 = pneg %p211
        %p322 = pneg %p240
        %p323 = pneg %p237
        %s324 = sand.u32 %s227, 1
        %s325 = scalar_lea.sflag [#allocation4], %s324
        %s326 = sand.u32 %s227, 1
        %s327 = smul.addr %s326, 8
        %s328 = scalar_lea.vmem [#allocation3], %s327
        %s329 = smul.u32 8, %s25
        %p330 = scmp.lt.s32.totalorder %s329, 15
        %s331 = scalar_select %p330, %s329, 15
        %s332 = smul.addr %s331, 2
        %s333 = scalar_lea.vmem %s0, %s332
        %s334 = smul.u32 8, %s25
        %s335 = smul.u32 8, %s25
        %v336 = vld [vmem:[%s333] sm:$0xff]
        %v337 = vld [vmem:[%s333 + $0x8] sm:$0xff]
        %v338 = vld [vmem:[%s1] sm:$0xff]
        %v339 = vld [vmem:[%s1 + $0x8] sm:$0xff]
        %v340 = vld [vmem:[%s1 + $0x10] sm:$0xf]
        %342 = vset.pattern.permute.xlu0 0
        %343 = vperm.xlu0 %342, %v338
        %v344 = vpop.permute.xlu0 %343
        %347 = vset.pattern.permute.xlu0 0
        %348 = vperm.xlu0 %347, %v339
        %v349 = vpop.permute.xlu0 %348
        %352 = vset.pattern.permute.xlu0 0
        %353 = vperm.xlu0 %352, %v340
        %v354 = vpop.permute.xlu0 %353
        %v358 = vlaneseq
        %v359 = vshrl.u32 %v358, 7
        %v360 = vsub.s32 0, %v359
        %v361 = vrot.slane %v336, %v360
        %v362 = vlaneseq
        %v363 = vshrl.u32 %v362, 7
        %v364 = vsub.s32 2, %v363
        %v365 = vrot.slane %v336, %v364
        %v366 = vlaneseq
        %v367 = vshrl.u32 %v366, 7
        %v368 = vsub.s32 4, %v367
        %v369 = vrot.slane %v336, %v368
        %v370 = vlaneseq
        %v371 = vshrl.u32 %v370, 7
        %v372 = vsub.s32 6, %v371
        %v373 = vrot.slane %v336, %v372
        %v374 = vlaneseq
        %v375 = vshrl.u32 %v374, 7
        %v376 = vsub.s32 0, %v375
        %v377 = vrot.slane %v337, %v376
        %v378 = vlaneseq
        %v379 = vshrl.u32 %v378, 7
        %v380 = vsub.s32 2, %v379
        %v381 = vrot.slane %v337, %v380
        %v382 = vlaneseq
        %v383 = vshrl.u32 %v382, 7
        %v384 = vsub.s32 4, %v383
        %v385 = vrot.slane %v337, %v384
        %v386 = vlaneseq
        %v387 = vshrl.u32 %v386, 7
        %v388 = vsub.s32 6, %v387
        %v389 = vrot.slane %v337, %v388
        %v398 = vlaneseq
        %v399 = vshrl.u32 %v398, 7
        %v400 = vsub.s32 0, %v399
        %v401 = vrot.slane %v361, %v400
        %v402 = vlaneseq
        %v403 = vshrl.u32 %v402, 7
        %v404 = vsub.s32 0, %v403
        %v405 = vrot.slane %v365, %v404
        %v406 = vlaneseq
        %v407 = vshrl.u32 %v406, 7
        %v408 = vsub.s32 0, %v407
        %v409 = vrot.slane %v369, %v408
        %v410 = vlaneseq
        %v411 = vshrl.u32 %v410, 7
        %v412 = vsub.s32 0, %v411
        %v413 = vrot.slane %v373, %v412
        %v414 = vlaneseq
        %v415 = vshrl.u32 %v414, 7
        %v416 = vsub.s32 0, %v415
        %v417 = vrot.slane %v377, %v416
        %v418 = vlaneseq
        %v419 = vshrl.u32 %v418, 7
        %v420 = vsub.s32 0, %v419
        %v421 = vrot.slane %v381, %v420
        %v422 = vlaneseq
        %v423 = vshrl.u32 %v422, 7
        %v424 = vsub.s32 0, %v423
        %v425 = vrot.slane %v385, %v424
        %v426 = vlaneseq
        %v427 = vshrl.u32 %v426, 7
        %v428 = vsub.s32 0, %v427
        %v429 = vrot.slane %v389, %v428
        %v430 = vmul.f32 %v344, %v401
        %v431 = vmul.f32 %v344, %v405
        %v432 = vmul.f32 %v344, %v409
        %v433 = vmul.f32 %v344, %v413
        %v434 = vmul.f32 %v344, %v417
        %v435 = vmul.f32 %v344, %v421
        %v436 = vmul.f32 %v344, %v425
        %v437 = vmul.f32 %v344, %v429
        %v438 = vmul.f32 %v349, %v401
        %v439 = vmul.f32 %v349, %v405
        %v440 = vmul.f32 %v349, %v409
        %v441 = vmul.f32 %v349, %v413
        %v442 = vmul.f32 %v349, %v417
        %v443 = vmul.f32 %v349, %v421
        %v444 = vmul.f32 %v349, %v425
        %v445 = vmul.f32 %v349, %v429
        %v446 = vmul.f32 %v354, %v401
        %v447 = vmul.f32 %v354, %v405
        %v448 = vmul.f32 %v354, %v409
        %v449 = vmul.f32 %v354, %v413
        %v450 = vmul.f32 %v354, %v417
        %v451 = vmul.f32 %v354, %v421
        %v452 = vmul.f32 %v354, %v425
        %v453 = vmul.f32 %v354, %v429
        %454 = vset.pattern.permute.xlu0 1
        %455 = vperm.xlu0 %454, %v338
        %v456 = vpop.permute.xlu0 %455
        %458 = vset.pattern.permute.xlu0 1
        %459 = vperm.xlu0 %458, %v339
        %v460 = vpop.permute.xlu0 %459
        %462 = vset.pattern.permute.xlu0 1
        %463 = vperm.xlu0 %462, %v340
        %v464 = vpop.permute.xlu0 %463
        %v466 = vlaneseq
        %v467 = vshrl.u32 %v466, 7
        %v468 = vsub.s32 1, %v467
        %v469 = vrot.slane %v336, %v468
        %v470 = vlaneseq
        %v471 = vshrl.u32 %v470, 7
        %v472 = vsub.s32 3, %v471
        %v473 = vrot.slane %v336, %v472
        %v474 = vlaneseq
        %v475 = vshrl.u32 %v474, 7
        %v476 = vsub.s32 5, %v475
        %v477 = vrot.slane %v336, %v476
        %v478 = vlaneseq
        %v479 = vshrl.u32 %v478, 7
        %v480 = vsub.s32 7, %v479
        %v481 = vrot.slane %v336, %v480
        %v482 = vlaneseq
        %v483 = vshrl.u32 %v482, 7
        %v484 = vsub.s32 1, %v483
        %v485 = vrot.slane %v337, %v484
        %v486 = vlaneseq
        %v487 = vshrl.u32 %v486, 7
        %v488 = vsub.s32 3, %v487
        %v489 = vrot.slane %v337, %v488
        %v490 = vlaneseq
        %v491 = vshrl.u32 %v490, 7
        %v492 = vsub.s32 5, %v491
        %v493 = vrot.slane %v337, %v492
        %v494 = vlaneseq
        %v495 = vshrl.u32 %v494, 7
        %v496 = vsub.s32 7, %v495
        %v497 = vrot.slane %v337, %v496
        %v506 = vlaneseq
        %v507 = vshrl.u32 %v506, 7
        %v508 = vsub.s32 1, %v507
        %v509 = vrot.slane %v469, %v508
        %v510 = vlaneseq
        %v511 = vshrl.u32 %v510, 7
        %v512 = vsub.s32 1, %v511
        %v513 = vrot.slane %v473, %v512
        %v514 = vlaneseq
        %v515 = vshrl.u32 %v514, 7
        %v516 = vsub.s32 1, %v515
        %v517 = vrot.slane %v477, %v516
        %v518 = vlaneseq
        %v519 = vshrl.u32 %v518, 7
        %v520 = vsub.s32 1, %v519
        %v521 = vrot.slane %v481, %v520
        %v522 = vlaneseq
        %v523 = vshrl.u32 %v522, 7
        %v524 = vsub.s32 1, %v523
        %v525 = vrot.slane %v485, %v524
        %v526 = vlaneseq
        %v527 = vshrl.u32 %v526, 7
        %v528 = vsub.s32 1, %v527
        %v529 = vrot.slane %v489, %v528
        %v530 = vlaneseq
        %v531 = vshrl.u32 %v530, 7
        %v532 = vsub.s32 1, %v531
        %v533 = vrot.slane %v493, %v532
        %v534 = vlaneseq
        %v535 = vshrl.u32 %v534, 7
        %v536 = vsub.s32 1, %v535
        %v537 = vrot.slane %v497, %v536
        %v538 = vmul.f32 %v456, %v509
        %v539 = vmul.f32 %v456, %v513
        %v540 = vmul.f32 %v456, %v517
        %v541 = vmul.f32 %v456, %v521
        %v542 = vmul.f32 %v456, %v525
        %v543 = vmul.f32 %v456, %v529
        %v544 = vmul.f32 %v456, %v533
        %v545 = vmul.f32 %v456, %v537
        %v546 = vmul.f32 %v460, %v509
        %v547 = vmul.f32 %v460, %v513
        %v548 = vmul.f32 %v460, %v517
        %v549 = vmul.f32 %v460, %v521
        %v550 = vmul.f32 %v460, %v525
        %v551 = vmul.f32 %v460, %v529
        %v552 = vmul.f32 %v460, %v533
        %v553 = vmul.f32 %v460, %v537
        %v554 = vmul.f32 %v464, %v509
        %v555 = vmul.f32 %v464, %v513
        %v556 = vmul.f32 %v464, %v517
        %v557 = vmul.f32 %v464, %v521
        %v558 = vmul.f32 %v464, %v525
        %v559 = vmul.f32 %v464, %v529
        %v560 = vmul.f32 %v464, %v533
        %v561 = vmul.f32 %v464, %v537
        %v562 = vadd.f32 %v430, %v538
        %v563 = vadd.f32 %v431, %v539
        %v564 = vadd.f32 %v432, %v540
        %v565 = vadd.f32 %v433, %v541
        %v566 = vadd.f32 %v434, %v542
        %v567 = vadd.f32 %v435, %v543
        %v568 = vadd.f32 %v436, %v544
        %v569 = vadd.f32 %v437, %v545
        %v570 = vadd.f32 %v438, %v546
        %v571 = vadd.f32 %v439, %v547
        %v572 = vadd.f32 %v440, %v548
        %v573 = vadd.f32 %v441, %v549
        %v574 = vadd.f32 %v442, %v550
        %v575 = vadd.f32 %v443, %v551
        %v576 = vadd.f32 %v444, %v552
        %v577 = vadd.f32 %v445, %v553
        %v578 = vadd.f32 %v446, %v554
        %v579 = vadd.f32 %v447, %v555
        %v580 = vadd.f32 %v448, %v556
        %v581 = vadd.f32 %v449, %v557
        %v582 = vadd.f32 %v450, %v558
        %v583 = vadd.f32 %v451, %v559
        %v584 = vadd.f32 %v452, %v560
        %v585 = vadd.f32 %v453, %v561
        %v586 = vld [vmem:[%s2] sm:$0xff]
        %v587 = vld [vmem:[%s2 + $0x8] sm:$0xff]
        %v588 = vld [vmem:[%s2 + $0x10] sm:$0xf]
        %590 = vset.pattern.permute.xlu0 0
        %591 = vperm.xlu0 %590, %v586
        %v592 = vpop.permute.xlu0 %591
        %595 = vset.pattern.permute.xlu0 0
        %596 = vperm.xlu0 %595, %v587
        %v597 = vpop.permute.xlu0 %596
        %600 = vset.pattern.permute.xlu0 0
        %601 = vperm.xlu0 %600, %v588
        %v602 = vpop.permute.xlu0 %601
        %v604 = vadd.f32 %v562, %v592
        %v605 = vadd.f32 %v563, %v592
        %v606 = vadd.f32 %v564, %v592
        %v607 = vadd.f32 %v565, %v592
        %v608 = vadd.f32 %v566, %v592
        %v609 = vadd.f32 %v567, %v592
        %v610 = vadd.f32 %v568, %v592
        %v611 = vadd.f32 %v569, %v592
        %v612 = vadd.f32 %v570, %v597
        %v613 = vadd.f32 %v571, %v597
        %v614 = vadd.f32 %v572, %v597
        %v615 = vadd.f32 %v573, %v597
        %v616 = vadd.f32 %v574, %v597
        %v617 = vadd.f32 %v575, %v597
        %v618 = vadd.f32 %v576, %v597
        %v619 = vadd.f32 %v577, %v597
        %v620 = vadd.f32 %v578, %v602
        %v621 = vadd.f32 %v579, %v602
        %v622 = vadd.f32 %v580, %v602
        %v623 = vadd.f32 %v581, %v602
        %v624 = vadd.f32 %v582, %v602
        %v625 = vadd.f32 %v583, %v602
        %v626 = vadd.f32 %v584, %v602
        %v627 = vadd.f32 %v585, %v602
        %v628 = vmax.f32 %v604, 0.0
        %v629 = vmax.f32 %v605, 0.0
        %v630 = vmax.f32 %v606, 0.0
        %v631 = vmax.f32 %v607, 0.0
        %v632 = vmax.f32 %v608, 0.0
        %v633 = vmax.f32 %v609, 0.0
        %v634 = vmax.f32 %v610, 0.0
        %v635 = vmax.f32 %v611, 0.0
        %v636 = vmax.f32 %v612, 0.0
        %v637 = vmax.f32 %v613, 0.0
        %v638 = vmax.f32 %v614, 0.0
        %v639 = vmax.f32 %v615, 0.0
        %v640 = vmax.f32 %v616, 0.0
        %v641 = vmax.f32 %v617, 0.0
        %v642 = vmax.f32 %v618, 0.0
        %v643 = vmax.f32 %v619, 0.0
        %v644 = vmax.f32 %v620, 0.0
        %v645 = vmax.f32 %v621, 0.0
        %v646 = vmax.f32 %v622, 0.0
        %v647 = vmax.f32 %v623, 0.0
        %v648 = vmax.f32 %v624, 0.0
        %v649 = vmax.f32 %v625, 0.0
        %v650 = vmax.f32 %v626, 0.0
        %v651 = vmax.f32 %v627, 0.0
        %v652 = vld [vmem:[%s3] sm:$0xff]
        %v653 = vld [vmem:[%s3 + $0x8] sm:$0xff]
        %v654 = vld [vmem:[%s3 + $0x10] sm:$0xf]
        %v655 = vld [vmem:[%s4] sm:$0xff]
        %v656 = vld [vmem:[%s4 + $0x8] sm:$0xff]
        %v657 = vld [vmem:[%s4 + $0x10] sm:$0xf]
        %659 = vset.pattern.permute.xlu0 0
        %660 = vperm.xlu0 %659, %v655
        %v661 = vpop.permute.xlu0 %660
        %664 = vset.pattern.permute.xlu0 0
        %665 = vperm.xlu0 %664, %v656
        %v666 = vpop.permute.xlu0 %665
        %669 = vset.pattern.permute.xlu0 0
        %670 = vperm.xlu0 %669, %v657
        %v671 = vpop.permute.xlu0 %670
        %vm673 = vcmask 162816
        %v675 = vsel %vm673, %v652, 0
        %v678 = vsel %vm673, %v653, 0
        %v681 = vsel %vm673, %v654, 0
        %vm683 = vcmask 1043456
        %v685 = vsel %vm683, %v644, 0
        %v688 = vsel %vm683, %v645, 0
        %v691 = vsel %vm683, %v646, 0
        %v694 = vsel %vm683, %v647, 0
        %v697 = vsel %vm683, %v648, 0
        %v700 = vsel %vm683, %v649, 0
        %v703 = vsel %vm683, %v650, 0
        %v706 = vsel %vm683, %v651, 0
        %708 = vmatprep.subr.mxu0 %v629
        %709 = vmatpush1.msra.mxu0 %v628
        %710 = vmatprep.subr.mxu0 %v637
        %711 = vmatpush1.msra.mxu0 %v636
        %712 = vmatprep.subr.mxu0 %v688
        %713 = vmatpush1.msra.mxu0 %v685
        %714 = vmatprep.subr.mxu0 0.0
        %715 = vmatpush1.msra.mxu0 0.0
        %716 = vmatprep.subr.mxu0 0.0
        %717 = vmatpush1.msra.mxu0 0.0
        %718 = vmatprep.subr.mxu0 0.0
        %719 = vmatpush1.msra.mxu0 0.0
        %720 = vmatprep.subr.mxu0 0.0
        %721 = vmatpush1.msra.mxu0 0.0
        %722 = vmatprep.subr.mxu0 0.0
        %723 = vmatpush1.msra.mxu0 0.0
        %724 = vmatprep.subr.mxu0 0.0
        %725 = vmatpush1.msra.mxu0 0.0
        %726 = vmatprep.subr.mxu0 0.0
        %727 = vmatpush1.msra.mxu0 0.0
        %728 = vmatprep.subr.mxu0 0.0
        %729 = vmatpush1.msra.mxu0 0.0
        %730 = vmatprep.subr.mxu0 0.0
        %731 = vmatpush1.msra.mxu0 0.0
        %732 = vmatprep.subr.mxu0 0.0
        %733 = vmatpush1.msra.mxu0 0.0
        %734 = vmatprep.subr.mxu0 0.0
        %735 = vmatpush1.msra.mxu0 0.0
        %736 = vmatprep.subr.mxu0 0.0
        %737 = vmatpush1.msra.mxu0 0.0
        %738 = vmatprep.subr.mxu0 0.0
        %739 = vmatpush1.msra.mxu0 0.0
        %740 = vmatprep.subr.mxu0 0.0
        %741 = vmatpush1.msra.mxu0 0.0
        %742 = vmatprep.subr.mxu0 0.0
        %743 = vmatpush1.msra.mxu0 0.0
        %744 = vmatprep.subr.mxu0 0.0
        %745 = vmatpush1.msra.mxu0 0.0
        %746 = vmatprep.subr.mxu0 0.0
        %747 = vmatpush1.msra.mxu0 0.0
        %748 = vmatprep.subr.mxu0 0.0
        %749 = vmatpush1.msra.mxu0 0.0
        %750 = vmatprep.subr.mxu0 0.0
        %751 = vmatpush1.msra.mxu0 0.0
        %752 = vmatprep.subr.mxu0 0.0
        %753 = vmatpush1.msra.mxu0 0.0
        %754 = vmatprep.subr.mxu0 0.0
        %755 = vmatpush1.msra.mxu0 0.0
        %756 = vmatprep.subr.mxu0 0.0
        %757 = vmatpush1.msra.mxu0 0.0
        %758 = vmatprep.subr.mxu0 0.0
        %759 = vmatpush1.msra.mxu0 0.0
        %760 = vmatprep.subr.mxu0 0.0
        %761 = vmatpush1.msra.mxu0 0.0
        %762 = vmatprep.subr.mxu0 0.0
        %763 = vmatpush1.msra.mxu0 0.0
        %764 = vmatprep.subr.mxu0 0.0
        %765 = vmatpush1.msra.mxu0 0.0
        %766 = vmatprep.subr.mxu0 0.0
        %767 = vmatpush1.msra.mxu0 0.0
        %768 = vmatprep.subr.mxu0 0.0
        %769 = vmatpush1.msra.mxu0 0.0
        %770 = vmatprep.subr.mxu0 0.0
        %771 = vmatpush1.msra.mxu0 0.0
        %772 = vmatprep.mubr.f32.mxu0 0.0
        %773 = vmatmul.mubr.f32.gmra.mrb[0].mxu0 %v675
        %v774 = vpop.f32.mrb[0].mxu0
        %v775 = vadd.f32 %v661, %v774
        %v776 = vpop.f32.mrb[0].mxu0
        %v777 = vadd.f32 %v661, %v776
        %778 = vmatprep.mubr.f32.mxu0 0.0
        %779 = vmatmul.mubr.f32.gmra.mrb[0].mxu0 %v678
        %v780 = vpop.f32.mrb[0].mxu0
        %v781 = vadd.f32 %v666, %v780
        %v782 = vpop.f32.mrb[0].mxu0
        %v783 = vadd.f32 %v666, %v782
        %784 = vmatprep.mubr.f32.mxu0 0.0
        %785 = vmatmul.mubr.f32.gmra.mrb[0].mxu0 %v681
        %v786 = vpop.f32.mrb[0].mxu0
        %v787 = vadd.f32 %v671, %v786
        %v788 = vpop.f32.mrb[0].mxu0
        %v789 = vadd.f32 %v671, %v788
        %790 = vdwg.mxu0
        %791 = vmatprep.subr.mxu0 %v631
        %792 = vmatpush1.msra.mxu0 %v630
        %793 = vmatprep.subr.mxu0 %v639
        %794 = vmatpush1.msra.mxu0 %v638
        %795 = vmatprep.subr.mxu0 %v694
        %796 = vmatpush1.msra.mxu0 %v691
        %797 = vmatprep.subr.mxu0 0.0
        %798 = vmatpush1.msra.mxu0 0.0
        %799 = vmatprep.subr.mxu0 0.0
        %800 = vmatpush1.msra.mxu0 0.0
        %801 = vmatprep.subr.mxu0 0.0
        %802 = vmatpush1.msra.mxu0 0.0
        %803 = vmatprep.subr.mxu0 0.0
        %804 = vmatpush1.msra.mxu0 0.0
        %805 = vmatprep.subr.mxu0 0.0
        %806 = vmatpush1.msra.mxu0 0.0
        %807 = vmatprep.subr.mxu0 0.0
        %808 = vmatpush1.msra.mxu0 0.0
        %809 = vmatprep.subr.mxu0 0.0
        %810 = vmatpush1.msra.mxu0 0.0
        %811 = vmatprep.subr.mxu0 0.0
        %812 = vmatpush1.msra.mxu0 0.0
        %813 = vmatprep.subr.mxu0 0.0
        %814 = vmatpush1.msra.mxu0 0.0
        %815 = vmatprep.subr.mxu0 0.0
        %816 = vmatpush1.msra.mxu0 0.0
        %817 = vmatprep.subr.mxu0 0.0
        %818 = vmatpush1.msra.mxu0 0.0
        %819 = vmatprep.subr.mxu0 0.0
        %820 = vmatpush1.msra.mxu0 0.0
        %821 = vmatprep.subr.mxu0 0.0
        %822 = vmatpush1.msra.mxu0 0.0
        %823 = vmatprep.subr.mxu0 0.0
        %824 = vmatpush1.msra.mxu0 0.0
        %825 = vmatprep.subr.mxu0 0.0
        %826 = vmatpush1.msra.mxu0 0.0
        %827 = vmatprep.subr.mxu0 0.0
        %828 = vmatpush1.msra.mxu0 0.0
        %829 = vmatprep.subr.mxu0 0.0
        %830 = vmatpush1.msra.mxu0 0.0
        %831 = vmatprep.subr.mxu0 0.0
        %832 = vmatpush1.msra.mxu0 0.0
        %833 = vmatprep.subr.mxu0 0.0
        %834 = vmatpush1.msra.mxu0 0.0
        %835 = vmatprep.subr.mxu0 0.0
        %836 = vmatpush1.msra.mxu0 0.0
        %837 = vmatprep.subr.mxu0 0.0
        %838 = vmatpush1.msra.mxu0 0.0
        %839 = vmatprep.subr.mxu0 0.0
        %840 = vmatpush1.msra.mxu0 0.0
        %841 = vmatprep.subr.mxu0 0.0
        %842 = vmatpush1.msra.mxu0 0.0
        %843 = vmatprep.subr.mxu0 0.0
        %844 = vmatpush1.msra.mxu0 0.0
        %845 = vmatprep.subr.mxu0 0.0
        %846 = vmatpush1.msra.mxu0 0.0
        %847 = vmatprep.subr.mxu0 0.0
        %848 = vmatpush1.msra.mxu0 0.0
        %849 = vmatprep.subr.mxu0 0.0
        %850 = vmatpush1.msra.mxu0 0.0
        %851 = vmatprep.subr.mxu0 0.0
        %852 = vmatpush1.msra.mxu0 0.0
        %853 = vmatprep.subr.mxu0 0.0
        %854 = vmatpush1.msra.mxu0 0.0
        %855 = vmatprep.mubr.f32.mxu0 0.0
        %856 = vmatmul.mubr.f32.gmra.mrb[0].mxu0 %v675
        %v857 = vpop.f32.mrb[0].mxu0
        %v858 = vadd.f32 %v661, %v857
        %v859 = vpop.f32.mrb[0].mxu0
        %v860 = vadd.f32 %v661, %v859
        %861 = vmatprep.mubr.f32.mxu0 0.0
        %862 = vmatmul.mubr.f32.gmra.mrb[0].mxu0 %v678
        %v863 = vpop.f32.mrb[0].mxu0
        %v864 = vadd.f32 %v666, %v863
        %v865 = vpop.f32.mrb[0].mxu0
        %v866 = vadd.f32 %v666, %v865
        %867 = vmatprep.mubr.f32.mxu0 0.0
        %868 = vmatmul.mubr.f32.gmra.mrb[0].mxu0 %v681
        %v869 = vpop.f32.mrb[0].mxu0
        %v870 = vadd.f32 %v671, %v869
        %v871 = vpop.f32.mrb[0].mxu0
        %v872 = vadd.f32 %v671, %v871
        %873 = vdwg.mxu0
        %874 = vmatprep.subr.mxu0 %v633
        %875 = vmatpush1.msra.mxu0 %v632
        %876 = vmatprep.subr.mxu0 %v641
        %877 = vmatpush1.msra.mxu0 %v640
        %878 = vmatprep.subr.mxu0 %v700
        %879 = vmatpush1.msra.mxu0 %v697
        %880 = vmatprep.subr.mxu0 0.0
        %881 = vmatpush1.msra.mxu0 0.0
        %882 = vmatprep.subr.mxu0 0.0
        %883 = vmatpush1.msra.mxu0 0.0
        %884 = vmatprep.subr.mxu0 0.0
        %885 = vmatpush1.msra.mxu0 0.0
        %886 = vmatprep.subr.mxu0 0.0
        %887 = vmatpush1.msra.mxu0 0.0
        %888 = vmatprep.subr.mxu0 0.0
        %889 = vmatpush1.msra.mxu0 0.0
        %890 = vmatprep.subr.mxu0 0.0
        %891 = vmatpush1.msra.mxu0 0.0
        %892 = vmatprep.subr.mxu0 0.0
        %893 = vmatpush1.msra.mxu0 0.0
        %894 = vmatprep.subr.mxu0 0.0
        %895 = vmatpush1.msra.mxu0 0.0
        %896 = vmatprep.subr.mxu0 0.0
        %897 = vmatpush1.msra.mxu0 0.0
        %898 = vmatprep.subr.mxu0 0.0
        %899 = vmatpush1.msra.mxu0 0.0
        %900 = vmatprep.subr.mxu0 0.0
        %901 = vmatpush1.msra.mxu0 0.0
        %902 = vmatprep.subr.mxu0 0.0
        %903 = vmatpush1.msra.mxu0 0.0
        %904 = vmatprep.subr.mxu0 0.0
        %905 = vmatpush1.msra.mxu0 0.0
        %906 = vmatprep.subr.mxu0 0.0
        %907 = vmatpush1.msra.mxu0 0.0
        %908 = vmatprep.subr.mxu0 0.0
        %909 = vmatpush1.msra.mxu0 0.0
        %910 = vmatprep.subr.mxu0 0.0
        %911 = vmatpush1.msra.mxu0 0.0
        %912 = vmatprep.subr.mxu0 0.0
        %913 = vmatpush1.msra.mxu0 0.0
        %914 = vmatprep.subr.mxu0 0.0
        %915 = vmatpush1.msra.mxu0 0.0
        %916 = vmatprep.subr.mxu0 0.0
        %917 = vmatpush1.msra.mxu0 0.0
        %918 = vmatprep.subr.mxu0 0.0
        %919 = vmatpush1.msra.mxu0 0.0
        %920 = vmatprep.subr.mxu0 0.0
        %921 = vmatpush1.msra.mxu0 0.0
        %922 = vmatprep.subr.mxu0 0.0
        %923 = vmatpush1.msra.mxu0 0.0
        %924 = vmatprep.subr.mxu0 0.0
        %925 = vmatpush1.msra.mxu0 0.0
        %926 = vmatprep.subr.mxu0 0.0
        %927 = vmatpush1.msra.mxu0 0.0
        %928 = vmatprep.subr.mxu0 0.0
        %929 = vmatpush1.msra.mxu0 0.0
        %930 = vmatprep.subr.mxu0 0.0
        %931 = vmatpush1.msra.mxu0 0.0
        %932 = vmatprep.subr.mxu0 0.0
        %933 = vmatpush1.msra.mxu0 0.0
        %934 = vmatprep.subr.mxu0 0.0
        %935 = vmatpush1.msra.mxu0 0.0
        %936 = vmatprep.subr.mxu0 0.0
        %937 = vmatpush1.msra.mxu0 0.0
        %938 = vmatprep.mubr.f32.mxu0 0.0
        %939 = vmatmul.mubr.f32.gmra.mrb[0].mxu0 %v675
        %v940 = vpop.f32.mrb[0].mxu0
        %v941 = vadd.f32 %v661, %v940
        %v942 = vpop.f32.mrb[0].mxu0
        %v943 = vadd.f32 %v661, %v942
        %944 = vmatprep.mubr.f32.mxu0 0.0
        %945 = vmatmul.mubr.f32.gmra.mrb[0].mxu0 %v678
        %v946 = vpop.f32.mrb[0].mxu0
        %v947 = vadd.f32 %v666, %v946
        %v948 = vpop.f32.mrb[0].mxu0
        %v949 = vadd.f32 %v666, %v948
        %950 = vmatprep.mubr.f32.mxu0 0.0
        %951 = vmatmul.mubr.f32.gmra.mrb[0].mxu0 %v681
        %v952 = vpop.f32.mrb[0].mxu0
        %v953 = vadd.f32 %v671, %v952
        %v954 = vpop.f32.mrb[0].mxu0
        %v955 = vadd.f32 %v671, %v954
        %956 = vdwg.mxu0
        %957 = vmatprep.subr.mxu0 %v635
        %958 = vmatpush1.msra.mxu0 %v634
        %959 = vmatprep.subr.mxu0 %v643
        %960 = vmatpush1.msra.mxu0 %v642
        %961 = vmatprep.subr.mxu0 %v706
        %962 = vmatpush1.msra.mxu0 %v703
        %963 = vmatprep.subr.mxu0 0.0
        %964 = vmatpush1.msra.mxu0 0.0
        %965 = vmatprep.subr.mxu0 0.0
        %966 = vmatpush1.msra.mxu0 0.0
        %967 = vmatprep.subr.mxu0 0.0
        %968 = vmatpush1.msra.mxu0 0.0
        %969 = vmatprep.subr.mxu0 0.0
        %970 = vmatpush1.msra.mxu0 0.0
        %971 = vmatprep.subr.mxu0 0.0
        %972 = vmatpush1.msra.mxu0 0.0
        %973 = vmatprep.subr.mxu0 0.0
        %974 = vmatpush1.msra.mxu0 0.0
        %975 = vmatprep.subr.mxu0 0.0
        %976 = vmatpush1.msra.mxu0 0.0
        %977 = vmatprep.subr.mxu0 0.0
        %978 = vmatpush1.msra.mxu0 0.0
        %979 = vmatprep.subr.mxu0 0.0
        %980 = vmatpush1.msra.mxu0 0.0
        %981 = vmatprep.subr.mxu0 0.0
        %982 = vmatpush1.msra.mxu0 0.0
        %983 = vmatprep.subr.mxu0 0.0
        %984 = vmatpush1.msra.mxu0 0.0
        %985 = vmatprep.subr.mxu0 0.0
        %986 = vmatpush1.msra.mxu0 0.0
        %987 = vmatprep.subr.mxu0 0.0
        %988 = vmatpush1.msra.mxu0 0.0
        %989 = vmatprep.subr.mxu0 0.0
        %990 = vmatpush1.msra.mxu0 0.0
        %991 = vmatprep.subr.mxu0 0.0
        %992 = vmatpush1.msra.mxu0 0.0
        %993 = vmatprep.subr.mxu0 0.0
        %994 = vmatpush1.msra.mxu0 0.0
        %995 = vmatprep.subr.mxu0 0.0
        %996 = vmatpush1.msra.mxu0 0.0
        %997 = vmatprep.subr.mxu0 0.0
        %998 = vmatpush1.msra.mxu0 0.0
        %999 = vmatprep.subr.mxu0 0.0
        %1000 = vmatpush1.msra.mxu0 0.0
        %1001 = vmatprep.subr.mxu0 0.0
        %1002 = vmatpush1.msra.mxu0 0.0
        %1003 = vmatprep.subr.mxu0 0.0
        %1004 = vmatpush1.msra.mxu0 0.0
        %1005 = vmatprep.subr.mxu0 0.0
        %1006 = vmatpush1.msra.mxu0 0.0
        %1007 = vmatprep.subr.mxu0 0.0
        %1008 = vmatpush1.msra.mxu0 0.0
        %1009 = vmatprep.subr.mxu0 0.0
        %1010 = vmatpush1.msra.mxu0 0.0
        %1011 = vmatprep.subr.mxu0 0.0
        %1012 = vmatpush1.msra.mxu0 0.0
        %1013 = vmatprep.subr.mxu0 0.0
        %1014 = vmatpush1.msra.mxu0 0.0
        %1015 = vmatprep.subr.mxu0 0.0
        %1016 = vmatpush1.msra.mxu0 0.0
        %1017 = vmatprep.subr.mxu0 0.0
        %1018 = vmatpush1.msra.mxu0 0.0
        %1019 = vmatprep.subr.mxu0 0.0
        %1020 = vmatpush1.msra.mxu0 0.0
        %1021 = vmatprep.mubr.f32.mxu0 0.0
        %1022 = vmatmul.mubr.f32.gmra.mrb[0].mxu0 %v675
        %v1023 = vpop.f32.mrb[0].mxu0
        %v1024 = vadd.f32 %v661, %v1023
        %v1025 = vpop.f32.mrb[0].mxu0
        %v1026 = vadd.f32 %v661, %v1025
        %1027 = vmatprep.mubr.f32.mxu0 0.0
        %1028 = vmatmul.mubr.f32.gmra.mrb[0].mxu0 %v678
        %v1029 = vpop.f32.mrb[0].mxu0
        %v1030 = vadd.f32 %v666, %v1029
        %v1031 = vpop.f32.mrb[0].mxu0
        %v1032 = vadd.f32 %v666, %v1031
        %1033 = vmatprep.mubr.f32.mxu0 0.0
        %1034 = vmatmul.mubr.f32.gmra.mrb[0].mxu0 %v681
        %v1035 = vpop.f32.mrb[0].mxu0
        %v1036 = vadd.f32 %v671, %v1035
        %v1037 = vpop.f32.mrb[0].mxu0
        %v1038 = vadd.f32 %v671, %v1037
        %1039 = vdwg.mxu0
        %v1040 = vmax.f32 %v775, 0.0
        %v1041 = vmax.f32 %v777, 0.0
        %v1042 = vmax.f32 %v858, 0.0
        %v1043 = vmax.f32 %v860, 0.0
        %v1044 = vmax.f32 %v941, 0.0
        %v1045 = vmax.f32 %v943, 0.0
        %v1046 = vmax.f32 %v1024, 0.0
        %v1047 = vmax.f32 %v1026, 0.0
        %v1048 = vmax.f32 %v781, 0.0
        %v1049 = vmax.f32 %v783, 0.0
        %v1050 = vmax.f32 %v864, 0.0
        %v1051 = vmax.f32 %v866, 0.0
        %v1052 = vmax.f32 %v947, 0.0
        %v1053 = vmax.f32 %v949, 0.0
        %v1054 = vmax.f32 %v1030, 0.0
        %v1055 = vmax.f32 %v1032, 0.0
        %v1056 = vmax.f32 %v787, 0.0
        %v1057 = vmax.f32 %v789, 0.0
        %v1058 = vmax.f32 %v870, 0.0
        %v1059 = vmax.f32 %v872, 0.0
        %v1060 = vmax.f32 %v953, 0.0
        %v1061 = vmax.f32 %v955, 0.0
        %v1062 = vmax.f32 %v1036, 0.0
        %v1063 = vmax.f32 %v1038, 0.0
        %v1064 = vld [vmem:[%s5] sm:$0xff]
        %v1065 = vld [vmem:[%s5 + $0x8] sm:$0xff]
        %v1066 = vld [vmem:[%s5 + $0x10] sm:$0xf]
        %v1067 = vld [vmem:[%s6] sm:$0xff]
        %v1068 = vld [vmem:[%s6 + $0x8] sm:$0xff]
        %v1069 = vld [vmem:[%s6 + $0x10] sm:$0xf]
        %1071 = vset.pattern.permute.xlu0 0
        %1072 = vperm.xlu0 %1071, %v1067
        %v1073 = vpop.permute.xlu0 %1072
        %1076 = vset.pattern.permute.xlu0 0
        %1077 = vperm.xlu0 %1076, %v1068
        %v1078 = vpop.permute.xlu0 %1077
        %1081 = vset.pattern.permute.xlu0 0
        %1082 = vperm.xlu0 %1081, %v1069
        %v1083 = vpop.permute.xlu0 %1082
        %v1086 = vsel %vm673, %v1064, 0
        %v1089 = vsel %vm673, %v1065, 0
        %v1092 = vsel %vm673, %v1066, 0
        %v1095 = vsel %vm683, %v1056, 0
        %v1098 = vsel %vm683, %v1057, 0
        %v1101 = vsel %vm683, %v1058, 0
        %v1104 = vsel %vm683, %v1059, 0
        %v1107 = vsel %vm683, %v1060, 0
        %v1110 = vsel %vm683, %v1061, 0
        %v1113 = vsel %vm683, %v1062, 0
        %v1116 = vsel %vm683, %v1063, 0
        %1118 = vmatprep.subr.mxu0 %v1041
        %1119 = vmatpush1.msra.mxu0 %v1040
        %1120 = vmatprep.subr.mxu0 %v1049
        %1121 = vmatpush1.msra.mxu0 %v1048
        %1122 = vmatprep.subr.mxu0 %v1098
        %1123 = vmatpush1.msra.mxu0 %v1095
        %1124 = vmatprep.subr.mxu0 0.0
        %1125 = vmatpush1.msra.mxu0 0.0
        %1126 = vmatprep.subr.mxu0 0.0
        %1127 = vmatpush1.msra.mxu0 0.0
        %1128 = vmatprep.subr.mxu0 0.0
        %1129 = vmatpush1.msra.mxu0 0.0
        %1130 = vmatprep.subr.mxu0 0.0
        %1131 = vmatpush1.msra.mxu0 0.0
        %1132 = vmatprep.subr.mxu0 0.0
        %1133 = vmatpush1.msra.mxu0 0.0
        %1134 = vmatprep.subr.mxu0 0.0
        %1135 = vmatpush1.msra.mxu0 0.0
        %1136 = vmatprep.subr.mxu0 0.0
        %1137 = vmatpush1.msra.mxu0 0.0
        %1138 = vmatprep.subr.mxu0 0.0
        %1139 = vmatpush1.msra.mxu0 0.0
        %1140 = vmatprep.subr.mxu0 0.0
        %1141 = vmatpush1.msra.mxu0 0.0
        %1142 = vmatprep.subr.mxu0 0.0
        %1143 = vmatpush1.msra.mxu0 0.0
        %1144 = vmatprep.subr.mxu0 0.0
        %1145 = vmatpush1.msra.mxu0 0.0
        %1146 = vmatprep.subr.mxu0 0.0
        %1147 = vmatpush1.msra.mxu0 0.0
        %1148 = vmatprep.subr.mxu0 0.0
        %1149 = vmatpush1.msra.mxu0 0.0
        %1150 = vmatprep.subr.mxu0 0.0
        %1151 = vmatpush1.msra.mxu0 0.0
        %1152 = vmatprep.subr.mxu0 0.0
        %1153 = vmatpush1.msra.mxu0 0.0
        %1154 = vmatprep.subr.mxu0 0.0
        %1155 = vmatpush1.msra.mxu0 0.0
        %1156 = vmatprep.subr.mxu0 0.0
        %1157 = vmatpush1.msra.mxu0 0.0
        %1158 = vmatprep.subr.mxu0 0.0
        %1159 = vmatpush1.msra.mxu0 0.0
        %1160 = vmatprep.subr.mxu0 0.0
        %1161 = vmatpush1.msra.mxu0 0.0
        %1162 = vmatprep.subr.mxu0 0.0
        %1163 = vmatpush1.msra.mxu0 0.0
        %1164 = vmatprep.subr.mxu0 0.0
        %1165 = vmatpush1.msra.mxu0 0.0
        %1166 = vmatprep.subr.mxu0 0.0
        %1167 = vmatpush1.msra.mxu0 0.0
        %1168 = vmatprep.subr.mxu0 0.0
        %1169 = vmatpush1.msra.mxu0 0.0
        %1170 = vmatprep.subr.mxu0 0.0
        %1171 = vmatpush1.msra.mxu0 0.0
        %1172 = vmatprep.subr.mxu0 0.0
        %1173 = vmatpush1.msra.mxu0 0.0
        %1174 = vmatprep.subr.mxu0 0.0
        %1175 = vmatpush1.msra.mxu0 0.0
        %1176 = vmatprep.subr.mxu0 0.0
        %1177 = vmatpush1.msra.mxu0 0.0
        %1178 = vmatprep.subr.mxu0 0.0
        %1179 = vmatpush1.msra.mxu0 0.0
        %1180 = vmatprep.subr.mxu0 0.0
        %1181 = vmatpush1.msra.mxu0 0.0
        %1182 = vmatprep.mubr.f32.mxu0 0.0
        %1183 = vmatmul.mubr.f32.gmra.mrb[0].mxu0 %v1086
        %v1184 = vpop.f32.mrb[0].mxu0
        %v1185 = vadd.f32 %v1073, %v1184
        %v1186 = vpop.f32.mrb[0].mxu0
        %v1187 = vadd.f32 %v1073, %v1186
        %1188 = vmatprep.mubr.f32.mxu0 0.0
        %1189 = vmatmul.mubr.f32.gmra.mrb[0].mxu0 %v1089
        %v1190 = vpop.f32.mrb[0].mxu0
        %v1191 = vadd.f32 %v1078, %v1190
        %v1192 = vpop.f32.mrb[0].mxu0
        %v1193 = vadd.f32 %v1078, %v1192
        %1194 = vmatprep.mubr.f32.mxu0 0.0
        %1195 = vmatmul.mubr.f32.gmra.mrb[0].mxu0 %v1092
        %v1196 = vpop.f32.mrb[0].mxu0
        %v1197 = vadd.f32 %v1083, %v1196
        %v1198 = vpop.f32.mrb[0].mxu0
        %v1199 = vadd.f32 %v1083, %v1198
        %1200 = vdwg.mxu0
        %1201 = vmatprep.subr.mxu0 %v1043
        %1202 = vmatpush1.msra.mxu0 %v1042
        %1203 = vmatprep.subr.mxu0 %v1051
        %1204 = vmatpush1.msra.mxu0 %v1050
        %1205 = vmatprep.subr.mxu0 %v1104
        %1206 = vmatpush1.msra.mxu0 %v1101
        %1207 = vmatprep.subr.mxu0 0.0
        %1208 = vmatpush1.msra.mxu0 0.0
        %1209 = vmatprep.subr.mxu0 0.0
        %1210 = vmatpush1.msra.mxu0 0.0
        %1211 = vmatprep.subr.mxu0 0.0
        %1212 = vmatpush1.msra.mxu0 0.0
        %1213 = vmatprep.subr.mxu0 0.0
        %1214 = vmatpush1.msra.mxu0 0.0
        %1215 = vmatprep.subr.mxu0 0.0
        %1216 = vmatpush1.msra.mxu0 0.0
        %1217 = vmatprep.subr.mxu0 0.0
        %1218 = vmatpush1.msra.mxu0 0.0
        %1219 = vmatprep.subr.mxu0 0.0
        %1220 = vmatpush1.msra.mxu0 0.0
        %1221 = vmatprep.subr.mxu0 0.0
        %1222 = vmatpush1.msra.mxu0 0.0
        %1223 = vmatprep.subr.mxu0 0.0
        %1224 = vmatpush1.msra.mxu0 0.0
        %1225 = vmatprep.subr.mxu0 0.0
        %1226 = vmatpush1.msra.mxu0 0.0
        %1227 = vmatprep.subr.mxu0 0.0
        %1228 = vmatpush1.msra.mxu0 0.0
        %1229 = vmatprep.subr.mxu0 0.0
        %1230 = vmatpush1.msra.mxu0 0.0
        %1231 = vmatprep.subr.mxu0 0.0
        %1232 = vmatpush1.msra.mxu0 0.0
        %1233 = vmatprep.subr.mxu0 0.0
        %1234 = vmatpush1.msra.mxu0 0.0
        %1235 = vmatprep.subr.mxu0 0.0
        %1236 = vmatpush1.msra.mxu0 0.0
        %1237 = vmatprep.subr.mxu0 0.0
        %1238 = vmatpush1.msra.mxu0 0.0
        %1239 = vmatprep.subr.mxu0 0.0
        %1240 = vmatpush1.msra.mxu0 0.0
        %1241 = vmatprep.subr.mxu0 0.0
        %1242 = vmatpush1.msra.mxu0 0.0
        %1243 = vmatprep.subr.mxu0 0.0
        %1244 = vmatpush1.msra.mxu0 0.0
        %1245 = vmatprep.subr.mxu0 0.0
        %1246 = vmatpush1.msra.mxu0 0.0
        %1247 = vmatprep.subr.mxu0 0.0
        %1248 = vmatpush1.msra.mxu0 0.0
        %1249 = vmatprep.subr.mxu0 0.0
        %1250 = vmatpush1.msra.mxu0 0.0
        %1251 = vmatprep.subr.mxu0 0.0
        %1252 = vmatpush1.msra.mxu0 0.0
        %1253 = vmatprep.subr.mxu0 0.0
        %1254 = vmatpush1.msra.mxu0 0.0
        %1255 = vmatprep.subr.mxu0 0.0
        %1256 = vmatpush1.msra.mxu0 0.0
        %1257 = vmatprep.subr.mxu0 0.0
        %1258 = vmatpush1.msra.mxu0 0.0
        %1259 = vmatprep.subr.mxu0 0.0
        %1260 = vmatpush1.msra.mxu0 0.0
        %1261 = vmatprep.subr.mxu0 0.0
        %1262 = vmatpush1.msra.mxu0 0.0
        %1263 = vmatprep.subr.mxu0 0.0
        %1264 = vmatpush1.msra.mxu0 0.0
        %1265 = vmatprep.mubr.f32.mxu0 0.0
        %1266 = vmatmul.mubr.f32.gmra.mrb[0].mxu0 %v1086
        %v1267 = vpop.f32.mrb[0].mxu0
        %v1268 = vadd.f32 %v1073, %v1267
        %v1269 = vpop.f32.mrb[0].mxu0
        %v1270 = vadd.f32 %v1073, %v1269
        %1271 = vmatprep.mubr.f32.mxu0 0.0
        %1272 = vmatmul.mubr.f32.gmra.mrb[0].mxu0 %v1089
        %v1273 = vpop.f32.mrb[0].mxu0
        %v1274 = vadd.f32 %v1078, %v1273
        %v1275 = vpop.f32.mrb[0].mxu0
        %v1276 = vadd.f32 %v1078, %v1275
        %1277 = vmatprep.mubr.f32.mxu0 0.0
        %1278 = vmatmul.mubr.f32.gmra.mrb[0].mxu0 %v1092
        %v1279 = vpop.f32.mrb[0].mxu0
        %v1280 = vadd.f32 %v1083, %v1279
        %v1281 = vpop.f32.mrb[0].mxu0
        %v1282 = vadd.f32 %v1083, %v1281
        %1283 = vdwg.mxu0
        %1284 = vmatprep.subr.mxu0 %v1045
        %1285 = vmatpush1.msra.mxu0 %v1044
        %1286 = vmatprep.subr.mxu0 %v1053
        %1287 = vmatpush1.msra.mxu0 %v1052
        %1288 = vmatprep.subr.mxu0 %v1110
        %1289 = vmatpush1.msra.mxu0 %v1107
        %1290 = vmatprep.subr.mxu0 0.0
        %1291 = vmatpush1.msra.mxu0 0.0
        %1292 = vmatprep.subr.mxu0 0.0
        %1293 = vmatpush1.msra.mxu0 0.0
        %1294 = vmatprep.subr.mxu0 0.0
        %1295 = vmatpush1.msra.mxu0 0.0
        %1296 = vmatprep.subr.mxu0 0.0
        %1297 = vmatpush1.msra.mxu0 0.0
        %1298 = vmatprep.subr.mxu0 0.0
        %1299 = vmatpush1.msra.mxu0 0.0
        %1300 = vmatprep.subr.mxu0 0.0
        %1301 = vmatpush1.msra.mxu0 0.0
        %1302 = vmatprep.subr.mxu0 0.0
        %1303 = vmatpush1.msra.mxu0 0.0
        %1304 = vmatprep.subr.mxu0 0.0
        %1305 = vmatpush1.msra.mxu0 0.0
        %1306 = vmatprep.subr.mxu0 0.0
        %1307 = vmatpush1.msra.mxu0 0.0
        %1308 = vmatprep.subr.mxu0 0.0
        %1309 = vmatpush1.msra.mxu0 0.0
        %1310 = vmatprep.subr.mxu0 0.0
        %1311 = vmatpush1.msra.mxu0 0.0
        %1312 = vmatprep.subr.mxu0 0.0
        %1313 = vmatpush1.msra.mxu0 0.0
        %1314 = vmatprep.subr.mxu0 0.0
        %1315 = vmatpush1.msra.mxu0 0.0
        %1316 = vmatprep.subr.mxu0 0.0
        %1317 = vmatpush1.msra.mxu0 0.0
        %1318 = vmatprep.subr.mxu0 0.0
        %1319 = vmatpush1.msra.mxu0 0.0
        %1320 = vmatprep.subr.mxu0 0.0
        %1321 = vmatpush1.msra.mxu0 0.0
        %1322 = vmatprep.subr.mxu0 0.0
        %1323 = vmatpush1.msra.mxu0 0.0
        %1324 = vmatprep.subr.mxu0 0.0
        %1325 = vmatpush1.msra.mxu0 0.0
        %1326 = vmatprep.subr.mxu0 0.0
        %1327 = vmatpush1.msra.mxu0 0.0
        %1328 = vmatprep.subr.mxu0 0.0
        %1329 = vmatpush1.msra.mxu0 0.0
        %1330 = vmatprep.subr.mxu0 0.0
        %1331 = vmatpush1.msra.mxu0 0.0
        %1332 = vmatprep.subr.mxu0 0.0
        %1333 = vmatpush1.msra.mxu0 0.0
        %1334 = vmatprep.subr.mxu0 0.0
        %1335 = vmatpush1.msra.mxu0 0.0
        %1336 = vmatprep.subr.mxu0 0.0
        %1337 = vmatpush1.msra.mxu0 0.0
        %1338 = vmatprep.subr.mxu0 0.0
        %1339 = vmatpush1.msra.mxu0 0.0
        %1340 = vmatprep.subr.mxu0 0.0
        %1341 = vmatpush1.msra.mxu0 0.0
        %1342 = vmatprep.subr.mxu0 0.0
        %1343 = vmatpush1.msra.mxu0 0.0
        %1344 = vmatprep.subr.mxu0 0.0
        %1345 = vmatpush1.msra.mxu0 0.0
        %1346 = vmatprep.subr.mxu0 0.0
        %1347 = vmatpush1.msra.mxu0 0.0
        %1348 = vmatprep.mubr.f32.mxu0 0.0
        %1349 = vmatmul.mubr.f32.gmra.mrb[0].mxu0 %v1086
        %v1350 = vpop.f32.mrb[0].mxu0
        %v1351 = vadd.f32 %v1073, %v1350
        %v1352 = vpop.f32.mrb[0].mxu0
        %v1353 = vadd.f32 %v1073, %v1352
        %1354 = vmatprep.mubr.f32.mxu0 0.0
        %1355 = vmatmul.mubr.f32.gmra.mrb[0].mxu0 %v1089
        %v1356 = vpop.f32.mrb[0].mxu0
        %v1357 = vadd.f32 %v1078, %v1356
        %v1358 = vpop.f32.mrb[0].mxu0
        %v1359 = vadd.f32 %v1078, %v1358
        %1360 = vmatprep.mubr.f32.mxu0 0.0
        %1361 = vmatmul.mubr.f32.gmra.mrb[0].mxu0 %v1092
        %v1362 = vpop.f32.mrb[0].mxu0
        %v1363 = vadd.f32 %v1083, %v1362
        %v1364 = vpop.f32.mrb[0].mxu0
        %v1365 = vadd.f32 %v1083, %v1364
        %1366 = vdwg.mxu0
        %1367 = vmatprep.subr.mxu0 %v1047
        %1368 = vmatpush1.msra.mxu0 %v1046
        %1369 = vmatprep.subr.mxu0 %v1055
        %1370 = vmatpush1.msra.mxu0 %v1054
        %1371 = vmatprep.subr.mxu0 %v1116
        %1372 = vmatpush1.msra.mxu0 %v1113
        %1373 = vmatprep.subr.mxu0 0.0
        %1374 = vmatpush1.msra.mxu0 0.0
        %1375 = vmatprep.subr.mxu0 0.0
        %1376 = vmatpush1.msra.mxu0 0.0
        %1377 = vmatprep.subr.mxu0 0.0
        %1378 = vmatpush1.msra.mxu0 0.0
        %1379 = vmatprep.subr.mxu0 0.0
        %1380 = vmatpush1.msra.mxu0 0.0
        %1381 = vmatprep.subr.mxu0 0.0
        %1382 = vmatpush1.msra.mxu0 0.0
        %1383 = vmatprep.subr.mxu0 0.0
        %1384 = vmatpush1.msra.mxu0 0.0
        %1385 = vmatprep.subr.mxu0 0.0
        %1386 = vmatpush1.msra.mxu0 0.0
        %1387 = vmatprep.subr.mxu0 0.0
        %1388 = vmatpush1.msra.mxu0 0.0
        %1389 = vmatprep.subr.mxu0 0.0
        %1390 = vmatpush1.msra.mxu0 0.0
        %1391 = vmatprep.subr.mxu0 0.0
        %1392 = vmatpush1.msra.mxu0 0.0
        %1393 = vmatprep.subr.mxu0 0.0
        %1394 = vmatpush1.msra.mxu0 0.0
        %1395 = vmatprep.subr.mxu0 0.0
        %1396 = vmatpush1.msra.mxu0 0.0
        %1397 = vmatprep.subr.mxu0 0.0
        %1398 = vmatpush1.msra.mxu0 0.0
        %1399 = vmatprep.subr.mxu0 0.0
        %1400 = vmatpush1.msra.mxu0 0.0
        %1401 = vmatprep.subr.mxu0 0.0
        %1402 = vmatpush1.msra.mxu0 0.0
        %1403 = vmatprep.subr.mxu0 0.0
        %1404 = vmatpush1.msra.mxu0 0.0
        %1405 = vmatprep.subr.mxu0 0.0
        %1406 = vmatpush1.msra.mxu0 0.0
        %1407 = vmatprep.subr.mxu0 0.0
        %1408 = vmatpush1.msra.mxu0 0.0
        %1409 = vmatprep.subr.mxu0 0.0
        %1410 = vmatpush1.msra.mxu0 0.0
        %1411 = vmatprep.subr.mxu0 0.0
        %1412 = vmatpush1.msra.mxu0 0.0
        %1413 = vmatprep.subr.mxu0 0.0
        %1414 = vmatpush1.msra.mxu0 0.0
        %1415 = vmatprep.subr.mxu0 0.0
        %1416 = vmatpush1.msra.mxu0 0.0
        %1417 = vmatprep.subr.mxu0 0.0
        %1418 = vmatpush1.msra.mxu0 0.0
        %1419 = vmatprep.subr.mxu0 0.0
        %1420 = vmatpush1.msra.mxu0 0.0
        %1421 = vmatprep.subr.mxu0 0.0
        %1422 = vmatpush1.msra.mxu0 0.0
        %1423 = vmatprep.subr.mxu0 0.0
        %1424 = vmatpush1.msra.mxu0 0.0
        %1425 = vmatprep.subr.mxu0 0.0
        %1426 = vmatpush1.msra.mxu0 0.0
        %1427 = vmatprep.subr.mxu0 0.0
        %1428 = vmatpush1.msra.mxu0 0.0
        %1429 = vmatprep.subr.mxu0 0.0
        %1430 = vmatpush1.msra.mxu0 0.0
        %1431 = vmatprep.mubr.f32.mxu0 0.0
        %1432 = vmatmul.mubr.f32.gmra.mrb[0].mxu0 %v1086
        %v1433 = vpop.f32.mrb[0].mxu0
        %v1434 = vadd.f32 %v1073, %v1433
        %v1435 = vpop.f32.mrb[0].mxu0
        %v1436 = vadd.f32 %v1073, %v1435
        %1437 = vmatprep.mubr.f32.mxu0 0.0
        %1438 = vmatmul.mubr.f32.gmra.mrb[0].mxu0 %v1089
        %v1439 = vpop.f32.mrb[0].mxu0
        %v1440 = vadd.f32 %v1078, %v1439
        %v1441 = vpop.f32.mrb[0].mxu0
        %v1442 = vadd.f32 %v1078, %v1441
        %1443 = vmatprep.mubr.f32.mxu0 0.0
        %1444 = vmatmul.mubr.f32.gmra.mrb[0].mxu0 %v1092
        %v1445 = vpop.f32.mrb[0].mxu0
        %v1446 = vadd.f32 %v1083, %v1445
        %v1447 = vpop.f32.mrb[0].mxu0
        %v1448 = vadd.f32 %v1083, %v1447
        %1449 = vdwg.mxu0
        %v1450 = vmax.f32 %v1185, 0.0
        %v1451 = vmax.f32 %v1187, 0.0
        %v1452 = vmax.f32 %v1268, 0.0
        %v1453 = vmax.f32 %v1270, 0.0
        %v1454 = vmax.f32 %v1351, 0.0
        %v1455 = vmax.f32 %v1353, 0.0
        %v1456 = vmax.f32 %v1434, 0.0
        %v1457 = vmax.f32 %v1436, 0.0
        %v1458 = vmax.f32 %v1191, 0.0
        %v1459 = vmax.f32 %v1193, 0.0
        %v1460 = vmax.f32 %v1274, 0.0
        %v1461 = vmax.f32 %v1276, 0.0
        %v1462 = vmax.f32 %v1357, 0.0
        %v1463 = vmax.f32 %v1359, 0.0
        %v1464 = vmax.f32 %v1440, 0.0
        %v1465 = vmax.f32 %v1442, 0.0
        %v1466 = vmax.f32 %v1197, 0.0
        %v1467 = vmax.f32 %v1199, 0.0
        %v1468 = vmax.f32 %v1280, 0.0
        %v1469 = vmax.f32 %v1282, 0.0
        %v1470 = vmax.f32 %v1363, 0.0
        %v1471 = vmax.f32 %v1365, 0.0
        %v1472 = vmax.f32 %v1446, 0.0
        %v1473 = vmax.f32 %v1448, 0.0
        %v1474 = vld [vmem:[%s7] sm:$0x1]
        %v1475 = vld [vmem:[#allocation2] sm:$0x1]
        %1477 = vset.pattern.permute.xlu0 0
        %1478 = vperm.xlu0 %1477, %v1475
        %v1479 = vpop.permute.xlu0 %1478
        %v1481 = vlaneseq
        %v1482 = vshrl.u32 %v1481, 7
        %v1483 = vsub.s32 0, %v1482
        %v1484 = vrot.slane %v1479, %v1483
        %v1486 = vsel %vm673, %v1474, 0
        %v1489 = vsel %vm683, %v1466, 0
        %v1492 = vsel %vm683, %v1467, 0
        %v1495 = vsel %vm683, %v1468, 0
        %v1498 = vsel %vm683, %v1469, 0
        %v1501 = vsel %vm683, %v1470, 0
        %v1504 = vsel %vm683, %v1471, 0
        %v1507 = vsel %vm683, %v1472, 0
        %v1510 = vsel %vm683, %v1473, 0
        %1512 = vmatprep.subr.mxu0 %v1451
        %1513 = vmatpush1.msra.mxu0 %v1450
        %1514 = vmatprep.subr.mxu0 %v1459
        %1515 = vmatpush1.msra.mxu0 %v1458
        %1516 = vmatprep.subr.mxu0 %v1492
        %1517 = vmatpush1.msra.mxu0 %v1489
        %1518 = vmatprep.subr.mxu0 0.0
        %1519 = vmatpush1.msra.mxu0 0.0
        %1520 = vmatprep.subr.mxu0 0.0
        %1521 = vmatpush1.msra.mxu0 0.0
        %1522 = vmatprep.subr.mxu0 0.0
        %1523 = vmatpush1.msra.mxu0 0.0
        %1524 = vmatprep.subr.mxu0 0.0
        %1525 = vmatpush1.msra.mxu0 0.0
        %1526 = vmatprep.subr.mxu0 0.0
        %1527 = vmatpush1.msra.mxu0 0.0
        %1528 = vmatprep.subr.mxu0 0.0
        %1529 = vmatpush1.msra.mxu0 0.0
        %1530 = vmatprep.subr.mxu0 0.0
        %1531 = vmatpush1.msra.mxu0 0.0
        %1532 = vmatprep.subr.mxu0 0.0
        %1533 = vmatpush1.msra.mxu0 0.0
        %1534 = vmatprep.subr.mxu0 0.0
        %1535 = vmatpush1.msra.mxu0 0.0
        %1536 = vmatprep.subr.mxu0 0.0
        %1537 = vmatpush1.msra.mxu0 0.0
        %1538 = vmatprep.subr.mxu0 0.0
        %1539 = vmatpush1.msra.mxu0 0.0
        %1540 = vmatprep.subr.mxu0 0.0
        %1541 = vmatpush1.msra.mxu0 0.0
        %1542 = vmatprep.subr.mxu0 0.0
        %1543 = vmatpush1.msra.mxu0 0.0
        %1544 = vmatprep.subr.mxu0 0.0
        %1545 = vmatpush1.msra.mxu0 0.0
        %1546 = vmatprep.subr.mxu0 0.0
        %1547 = vmatpush1.msra.mxu0 0.0
        %1548 = vmatprep.subr.mxu0 0.0
        %1549 = vmatpush1.msra.mxu0 0.0
        %1550 = vmatprep.subr.mxu0 0.0
        %1551 = vmatpush1.msra.mxu0 0.0
        %1552 = vmatprep.subr.mxu0 0.0
        %1553 = vmatpush1.msra.mxu0 0.0
        %1554 = vmatprep.subr.mxu0 0.0
        %1555 = vmatpush1.msra.mxu0 0.0
        %1556 = vmatprep.subr.mxu0 0.0
        %1557 = vmatpush1.msra.mxu0 0.0
        %1558 = vmatprep.subr.mxu0 0.0
        %1559 = vmatpush1.msra.mxu0 0.0
        %1560 = vmatprep.subr.mxu0 0.0
        %1561 = vmatpush1.msra.mxu0 0.0
        %1562 = vmatprep.subr.mxu0 0.0
        %1563 = vmatpush1.msra.mxu0 0.0
        %1564 = vmatprep.subr.mxu0 0.0
        %1565 = vmatpush1.msra.mxu0 0.0
        %1566 = vmatprep.subr.mxu0 0.0
        %1567 = vmatpush1.msra.mxu0 0.0
        %1568 = vmatprep.subr.mxu0 0.0
        %1569 = vmatpush1.msra.mxu0 0.0
        %1570 = vmatprep.subr.mxu0 0.0
        %1571 = vmatpush1.msra.mxu0 0.0
        %1572 = vmatprep.subr.mxu0 0.0
        %1573 = vmatpush1.msra.mxu0 0.0
        %1574 = vmatprep.subr.mxu0 0.0
        %1575 = vmatpush1.msra.mxu0 0.0
        %1576 = vmatprep.mubr.f32.mxu0 0.0
        %1577 = vmatmul.mubr.f32.gmra.mrb[0].mxu0 %v1486
        %v1578 = vpop.f32.mrb[0].mxu0
        %v1579 = vadd.f32 %v1484, %v1578
        %v1580 = vpop.f32.mrb[0].mxu0
        %v1581 = vadd.f32 %v1484, %v1580
        %1582 = vdwg.mxu0
        %1583 = vmatprep.subr.mxu0 %v1453
        %1584 = vmatpush1.msra.mxu0 %v1452
        %1585 = vmatprep.subr.mxu0 %v1461
        %1586 = vmatpush1.msra.mxu0 %v1460
        %1587 = vmatprep.subr.mxu0 %v1498
        %1588 = vmatpush1.msra.mxu0 %v1495
        %1589 = vmatprep.subr.mxu0 0.0
        %1590 = vmatpush1.msra.mxu0 0.0
        %1591 = vmatprep.subr.mxu0 0.0
        %1592 = vmatpush1.msra.mxu0 0.0
        %1593 = vmatprep.subr.mxu0 0.0
        %1594 = vmatpush1.msra.mxu0 0.0
        %1595 = vmatprep.subr.mxu0 0.0
        %1596 = vmatpush1.msra.mxu0 0.0
        %1597 = vmatprep.subr.mxu0 0.0
        %1598 = vmatpush1.msra.mxu0 0.0
        %1599 = vmatprep.subr.mxu0 0.0
        %1600 = vmatpush1.msra.mxu0 0.0
        %1601 = vmatprep.subr.mxu0 0.0
        %1602 = vmatpush1.msra.mxu0 0.0
        %1603 = vmatprep.subr.mxu0 0.0
        %1604 = vmatpush1.msra.mxu0 0.0
        %1605 = vmatprep.subr.mxu0 0.0
        %1606 = vmatpush1.msra.mxu0 0.0
        %1607 = vmatprep.subr.mxu0 0.0
        %1608 = vmatpush1.msra.mxu0 0.0
        %1609 = vmatprep.subr.mxu0 0.0
        %1610 = vmatpush1.msra.mxu0 0.0
        %1611 = vmatprep.subr.mxu0 0.0
        %1612 = vmatpush1.msra.mxu0 0.0
        %1613 = vmatprep.subr.mxu0 0.0
        %1614 = vmatpush1.msra.mxu0 0.0
        %1615 = vmatprep.subr.mxu0 0.0
        %1616 = vmatpush1.msra.mxu0 0.0
        %1617 = vmatprep.subr.mxu0 0.0
        %1618 = vmatpush1.msra.mxu0 0.0
        %1619 = vmatprep.subr.mxu0 0.0
        %1620 = vmatpush1.msra.mxu0 0.0
        %1621 = vmatprep.subr.mxu0 0.0
        %1622 = vmatpush1.msra.mxu0 0.0
        %1623 = vmatprep.subr.mxu0 0.0
        %1624 = vmatpush1.msra.mxu0 0.0
        %1625 = vmatprep.subr.mxu0 0.0
        %1626 = vmatpush1.msra.mxu0 0.0
        %1627 = vmatprep.subr.mxu0 0.0
        %1628 = vmatpush1.msra.mxu0 0.0
        %1629 = vmatprep.subr.mxu0 0.0
        %1630 = vmatpush1.msra.mxu0 0.0
        %1631 = vmatprep.subr.mxu0 0.0
        %1632 = vmatpush1.msra.mxu0 0.0
        %1633 = vmatprep.subr.mxu0 0.0
        %1634 = vmatpush1.msra.mxu0 0.0
        %1635 = vmatprep.subr.mxu0 0.0
        %1636 = vmatpush1.msra.mxu0 0.0
        %1637 = vmatprep.subr.mxu0 0.0
        %1638 = vmatpush1.msra.mxu0 0.0
        %1639 = vmatprep.subr.mxu0 0.0
        %1640 = vmatpush1.msra.mxu0 0.0
        %1641 = vmatprep.subr.mxu0 0.0
        %1642 = vmatpush1.msra.mxu0 0.0
        %1643 = vmatprep.subr.mxu0 0.0
        %1644 = vmatpush1.msra.mxu0 0.0
        %1645 = vmatprep.subr.mxu0 0.0
        %1646 = vmatpush1.msra.mxu0 0.0
        %1647 = vmatprep.mubr.f32.mxu0 0.0
        %1648 = vmatmul.mubr.f32.gmra.mrb[0].mxu0 %v1486
        %v1649 = vpop.f32.mrb[0].mxu0
        %v1650 = vadd.f32 %v1484, %v1649
        %v1651 = vpop.f32.mrb[0].mxu0
        %v1652 = vadd.f32 %v1484, %v1651
        %1653 = vdwg.mxu0
        %1654 = vmatprep.subr.mxu0 %v1455
        %1655 = vmatpush1.msra.mxu0 %v1454
        %1656 = vmatprep.subr.mxu0 %v1463
        %1657 = vmatpush1.msra.mxu0 %v1462
        %1658 = vmatprep.subr.mxu0 %v1504
        %1659 = vmatpush1.msra.mxu0 %v1501
        %1660 = vmatprep.subr.mxu0 0.0
        %1661 = vmatpush1.msra.mxu0 0.0
        %1662 = vmatprep.subr.mxu0 0.0
        %1663 = vmatpush1.msra.mxu0 0.0
        %1664 = vmatprep.subr.mxu0 0.0
        %1665 = vmatpush1.msra.mxu0 0.0
        %1666 = vmatprep.subr.mxu0 0.0
        %1667 = vmatpush1.msra.mxu0 0.0
        %1668 = vmatprep.subr.mxu0 0.0
        %1669 = vmatpush1.msra.mxu0 0.0
        %1670 = vmatprep.subr.mxu0 0.0
        %1671 = vmatpush1.msra.mxu0 0.0
        %1672 = vmatprep.subr.mxu0 0.0
        %1673 = vmatpush1.msra.mxu0 0.0
        %1674 = vmatprep.subr.mxu0 0.0
        %1675 = vmatpush1.msra.mxu0 0.0
        %1676 = vmatprep.subr.mxu0 0.0
        %1677 = vmatpush1.msra.mxu0 0.0
        %1678 = vmatprep.subr.mxu0 0.0
        %1679 = vmatpush1.msra.mxu0 0.0
        %1680 = vmatprep.subr.mxu0 0.0
        %1681 = vmatpush1.msra.mxu0 0.0
        %1682 = vmatprep.subr.mxu0 0.0
        %1683 = vmatpush1.msra.mxu0 0.0
        %1684 = vmatprep.subr.mxu0 0.0
        %1685 = vmatpush1.msra.mxu0 0.0
        %1686 = vmatprep.subr.mxu0 0.0
        %1687 = vmatpush1.msra.mxu0 0.0
        %1688 = vmatprep.subr.mxu0 0.0
        %1689 = vmatpush1.msra.mxu0 0.0
        %1690 = vmatprep.subr.mxu0 0.0
        %1691 = vmatpush1.msra.mxu0 0.0
        %1692 = vmatprep.subr.mxu0 0.0
        %1693 = vmatpush1.msra.mxu0 0.0
        %1694 = vmatprep.subr.mxu0 0.0
        %1695 = vmatpush1.msra.mxu0 0.0
        %1696 = vmatprep.subr.mxu0 0.0
        %1697 = vmatpush1.msra.mxu0 0.0
        %1698 = vmatprep.subr.mxu0 0.0
        %1699 = vmatpush1.msra.mxu0 0.0
        %1700 = vmatprep.subr.mxu0 0.0
        %1701 = vmatpush1.msra.mxu0 0.0
        %1702 = vmatprep.subr.mxu0 0.0
        %1703 = vmatpush1.msra.mxu0 0.0
        %1704 = vmatprep.subr.mxu0 0.0
        %1705 = vmatpush1.msra.mxu0 0.0
        %1706 = vmatprep.subr.mxu0 0.0
        %1707 = vmatpush1.msra.mxu0 0.0
        %1708 = vmatprep.subr.mxu0 0.0
        %1709 = vmatpush1.msra.mxu0 0.0
        %1710 = vmatprep.subr.mxu0 0.0
        %1711 = vmatpush1.msra.mxu0 0.0
        %1712 = vmatprep.subr.mxu0 0.0
        %1713 = vmatpush1.msra.mxu0 0.0
        %1714 = vmatprep.subr.mxu0 0.0
        %1715 = vmatpush1.msra.mxu0 0.0
        %1716 = vmatprep.subr.mxu0 0.0
        %1717 = vmatpush1.msra.mxu0 0.0
        %1718 = vmatprep.mubr.f32.mxu0 0.0
        %1719 = vmatmul.mubr.f32.gmra.mrb[0].mxu0 %v1486
        %v1720 = vpop.f32.mrb[0].mxu0
        %v1721 = vadd.f32 %v1484, %v1720
        %v1722 = vpop.f32.mrb[0].mxu0
        %v1723 = vadd.f32 %v1484, %v1722
        %1724 = vdwg.mxu0
        %1725 = vmatprep.subr.mxu0 %v1457
        %1726 = vmatpush1.msra.mxu0 %v1456
        %1727 = vmatprep.subr.mxu0 %v1465
        %1728 = vmatpush1.msra.mxu0 %v1464
        %1729 = vmatprep.subr.mxu0 %v1510
        %1730 = vmatpush1.msra.mxu0 %v1507
        %1731 = vmatprep.subr.mxu0 0.0
        %1732 = vmatpush1.msra.mxu0 0.0
        %1733 = vmatprep.subr.mxu0 0.0
        %1734 = vmatpush1.msra.mxu0 0.0
        %1735 = vmatprep.subr.mxu0 0.0
        %1736 = vmatpush1.msra.mxu0 0.0
        %1737 = vmatprep.subr.mxu0 0.0
        %1738 = vmatpush1.msra.mxu0 0.0
        %1739 = vmatprep.subr.mxu0 0.0
        %1740 = vmatpush1.msra.mxu0 0.0
        %1741 = vmatprep.subr.mxu0 0.0
        %1742 = vmatpush1.msra.mxu0 0.0
        %1743 = vmatprep.subr.mxu0 0.0
        %1744 = vmatpush1.msra.mxu0 0.0
        %1745 = vmatprep.subr.mxu0 0.0
        %1746 = vmatpush1.msra.mxu0 0.0
        %1747 = vmatprep.subr.mxu0 0.0
        %1748 = vmatpush1.msra.mxu0 0.0
        %1749 = vmatprep.subr.mxu0 0.0
        %1750 = vmatpush1.msra.mxu0 0.0
        %1751 = vmatprep.subr.mxu0 0.0
        %1752 = vmatpush1.msra.mxu0 0.0
        %1753 = vmatprep.subr.mxu0 0.0
        %1754 = vmatpush1.msra.mxu0 0.0
        %1755 = vmatprep.subr.mxu0 0.0
        %1756 = vmatpush1.msra.mxu0 0.0
        %1757 = vmatprep.subr.mxu0 0.0
        %1758 = vmatpush1.msra.mxu0 0.0
        %1759 = vmatprep.subr.mxu0 0.0
        %1760 = vmatpush1.msra.mxu0 0.0
        %1761 = vmatprep.subr.mxu0 0.0
        %1762 = vmatpush1.msra.mxu0 0.0
        %1763 = vmatprep.subr.mxu0 0.0
        %1764 = vmatpush1.msra.mxu0 0.0
        %1765 = vmatprep.subr.mxu0 0.0
        %1766 = vmatpush1.msra.mxu0 0.0
        %1767 = vmatprep.subr.mxu0 0.0
        %1768 = vmatpush1.msra.mxu0 0.0
        %1769 = vmatprep.subr.mxu0 0.0
        %1770 = vmatpush1.msra.mxu0 0.0
        %1771 = vmatprep.subr.mxu0 0.0
        %1772 = vmatpush1.msra.mxu0 0.0
        %1773 = vmatprep.subr.mxu0 0.0
        %1774 = vmatpush1.msra.mxu0 0.0
        %1775 = vmatprep.subr.mxu0 0.0
        %1776 = vmatpush1.msra.mxu0 0.0
        %1777 = vmatprep.subr.mxu0 0.0
        %1778 = vmatpush1.msra.mxu0 0.0
        %1779 = vmatprep.subr.mxu0 0.0
        %1780 = vmatpush1.msra.mxu0 0.0
        %1781 = vmatprep.subr.mxu0 0.0
        %1782 = vmatpush1.msra.mxu0 0.0
        %1783 = vmatprep.subr.mxu0 0.0
        %1784 = vmatpush1.msra.mxu0 0.0
        %1785 = vmatprep.subr.mxu0 0.0
        %1786 = vmatpush1.msra.mxu0 0.0
        %1787 = vmatprep.subr.mxu0 0.0
        %1788 = vmatpush1.msra.mxu0 0.0
        %1789 = vmatprep.mubr.f32.mxu0 0.0
        %1790 = vmatmul.mubr.f32.gmra.mrb[0].mxu0 %v1486
        %v1791 = vpop.f32.mrb[0].mxu0
        %v1792 = vadd.f32 %v1484, %v1791
        %v1793 = vpop.f32.mrb[0].mxu0
        %v1794 = vadd.f32 %v1484, %v1793
        %1795 = vdwg.mxu0
        %v1804 = vcombine.low %v1579, %v1581
        %v1805 = vcombine.low %v1650, %v1652
        %v1806 = vcombine.low %v1721, %v1723
        %v1807 = vcombine.low %v1792, %v1794
        %v1809 = vunpack.c.l.s4 1966171168
        %v1810 = vunpack.c.0.s8 %v1809
        %v1811 = vlaneseq
        %v1812 = vshrl.u32 %v1811, 7
        %v1813 = vsub.s32 %v1810, %v1812
        %v1814 = vrot.slane %v1804, %v1813
        %v1816 = vunpack.c.l.s4 1966171168
        %v1817 = vunpack.c.0.s8 %v1816
        %v1818 = vlaneseq
        %v1819 = vshrl.u32 %v1818, 7
        %v1820 = vsub.s32 %v1817, %v1819
        %v1821 = vrot.slane %v1805, %v1820
        %v1823 = vunpack.c.l.s4 1966171168
        %v1824 = vunpack.c.0.s8 %v1823
        %v1825 = vlaneseq
        %v1826 = vshrl.u32 %v1825, 7
        %v1827 = vsub.s32 %v1824, %v1826
        %v1828 = vrot.slane %v1806, %v1827
        %v1830 = vunpack.c.l.s4 1966171168
        %v1831 = vunpack.c.0.s8 %v1830
        %v1832 = vlaneseq
        %v1833 = vshrl.u32 %v1832, 7
        %v1834 = vsub.s32 %v1831, %v1833
        %v1835 = vrot.slane %v1807, %v1834
        %v1836 = vcombine.low %v1814, %v1821
        %v1837 = vcombine.low %v1828, %v1835
        %v1839 = vunpack.c.l.s4 1966171168
        %v1840 = vunpack.c.0.s8 %v1839
        %v1841 = vlaneseq
        %v1842 = vshrl.u32 %v1841, 7
        %v1843 = vsub.s32 %v1840, %v1842
        %v1844 = vrot.slane %v1836, %v1843
        %v1846 = vunpack.c.l.s4 1966171168
        %v1847 = vunpack.c.0.s8 %v1846
        %v1848 = vlaneseq
        %v1849 = vshrl.u32 %v1848, 7
        %v1850 = vsub.s32 %v1847, %v1849
        %v1851 = vrot.slane %v1837, %v1850
        %v1852 = vcombine.low %v1844, %v1851
        %1854 = vst [vmem:[%s328] sm:$0xff] %v1852
        %s1855 = sand.u32 %s227, 1
        %s1856 = scalar_lea.sflag [#allocation4], %s1855
        %s1857 = sand.u32 %s227, 1
        %s1858 = smul.addr %s1857, 8
        %s1859 = scalar_lea.vmem [#allocation3], %s1858
        // Predicated region
        $region57: #{tpu_custom_call.1} parent=55 // pred_check
          %p1860 = pneg %p237
        $region58: #{tpu_custom_call.1} parent=55 // pred_check_branch
          %1862 = sbr.rel (%p1860) target = $region60
        $region59: #{tpu_custom_call.1} parent=55 // pred_region
          %s1863 = smul.u32 8, %s25
          %s1865 = ssub.s32 128, 128
          %1866 = vsyncadd %s1856, %s1865
          %s1867 = smul.addr %s1863, 16
          %s1868 = scalar_lea.hbm %s9, %s1867
          %s1870 = sshll.u32 %s1859, 4
          %s1871 = int_to_ptr.vmem [resolvable:$true] %s1870
          %1873 = dma.vmem_to_hbm [thread:$0]  %s1871, 128, %s1868, %s1856
        $region60: #{tpu_custom_call.1} parent=55 // pred_fallthru
          _
      $region56: #{tpu_custom_call.1} parent=5 // pred_fallthru
        _
      %p1874 = scmp.le.s32.totalorder 2, %s20
      // Predicated region
      $region61: #{tpu_custom_call.1} parent=5 // pred_check
        %p1875 = pneg %p1874
      $region62: #{tpu_custom_call.1} parent=5 // pred_check_branch
        %1877 = sbr.rel (%p1875) target = $region64
      $region63: #{tpu_custom_call.1} parent=5 // pred_region
        %s1878 = ssub.s32 %s20, 2
        // Predicated region
        $region65: #{tpu_custom_call.1} parent=63 // pred_check
          %p1879 = pneg %p243
        $region66: #{tpu_custom_call.1} parent=63 // pred_check_branch
          %1881 = sbr.rel (%p1879) target = $region68
        $region67: #{tpu_custom_call.1} parent=63 // pred_region
          %s1882 = sand.u32 %s228, 1
          %s1883 = scalar_lea.sflag [#allocation4], %s1882
          %s1884 = sand.u32 %s228, 1
          %s1885 = smul.addr %s1884, 8
          %s1886 = scalar_lea.vmem [#allocation3], %s1885
          %1887 = dma.done %s1883, 128
        $region68: #{tpu_custom_call.1} parent=63 // pred_fallthru
          _
      $region64: #{tpu_custom_call.1} parent=5 // pred_fallthru
        _
    $region6: #{tpu_custom_call.1} parent=1 // loop_footer
      %s24 = sadd.s32 1, %s20
    $region7: #{tpu_custom_call.1} parent=1 // loop_footer_branch
      %19 = sbr.rel target = $region3
    $region8: #{tpu_custom_call.1} parent=1 // loop_exit
      _
    %1888 = vsyncpa [#allocation4], 1
    %s1889 = scalar_lea.sflag [#allocation4], 1
    %1890 = vsyncpa %s1889, 1

</llo_original>
